<compile_context>
chip_gen: v7x
topology: tpu7x:2x2x1
jax: 0.10.0
libtpu: 0.0.40
codegen_flags: <defaults>
</compile_context>

<pallas_src>
import functools

import jax
import jax.numpy as jnp
from jax.experimental import pallas as pl
from jax.experimental.pallas import tpu as pltpu


# Padded (lane-dense) dimensions.
D_IN_P = 512    # 500 -> 512
H1_P = 384      # 300 -> 384
H2_P = 128      # 128
LAT_P = 128     # 20  -> 128
H3_P = 128      # 128
H4_P = 384      # 300 -> 384
D_OUT_P = 512   # 500 -> 512


def _round_up(a, b):
    return (a + b - 1) // b * b


# ----------------------------------------------------------------------------
# Kernel: the whole 6-layer MLP chain for one batch tile, all in VMEM.
# Weights are bf16 (in, out); biases are f32 (1, out); accumulation is f32.
# ----------------------------------------------------------------------------
def ae_kernel(x_ref,
              w1_ref, b1_ref, w2_ref, b2_ref, w3_ref, b3_ref,
              w4_ref, b4_ref, w5_ref, b5_ref, w6_ref, b6_ref,
              enc_ref, dec_ref):
    x = x_ref[...]                                             # bf16 (bt, 512)

    # ---- encoder ----
    h = jnp.dot(x, w1_ref[...], preferred_element_type=jnp.float32) + b1_ref[...]
    h = jnp.maximum(h, 0.0).astype(jnp.bfloat16)               # ReLU
    h = jnp.dot(h, w2_ref[...], preferred_element_type=jnp.float32) + b2_ref[...]
    h = jnp.maximum(h, 0.0).astype(jnp.bfloat16)               # ReLU
    enc = jnp.dot(h, w3_ref[...], preferred_element_type=jnp.float32) + b3_ref[...]
    enc_ref[...] = enc.astype(enc_ref.dtype)                   # (bt, 128) lane-dense

    # ---- decoder ----
    enc_b = enc.astype(jnp.bfloat16)
    h = jnp.dot(enc_b, w4_ref[...], preferred_element_type=jnp.float32) + b4_ref[...]
    h = jnp.maximum(h, 0.0).astype(jnp.bfloat16)               # ReLU
    h = jnp.dot(h, w5_ref[...], preferred_element_type=jnp.float32) + b5_ref[...]
    h = jnp.maximum(h, 0.0).astype(jnp.bfloat16)               # ReLU
    dec = jnp.dot(h, w6_ref[...], preferred_element_type=jnp.float32) + b6_ref[...]
    dec_ref[...] = dec.astype(dec_ref.dtype)                   # (bt, 512) lane-dense


# ----------------------------------------------------------------------------
# Param padding / casting (exact: all pad entries are zero).
# ----------------------------------------------------------------------------
def _pad_params(params):
    (w1, b1, w2, b2, w3, b3, w4, b4, w5, b5, w6, b6) = params

    def pad_w(w, rows, cols):
        return jnp.pad(w, ((0, rows - w.shape[0]), (0, cols - w.shape[1]))
                       ).astype(jnp.bfloat16)

    def pad_b(b, cols):
        return jnp.pad(b, ((0, 0), (0, cols - b.shape[1]))).astype(jnp.float32)

    return (pad_w(w1, D_IN_P, H1_P), pad_b(b1, H1_P),
            pad_w(w2, H1_P, H2_P),  pad_b(b2, H2_P),
            pad_w(w3, H2_P, LAT_P), pad_b(b3, LAT_P),
            pad_w(w4, LAT_P, H3_P), pad_b(b4, H3_P),
            pad_w(w5, H3_P, H4_P),  pad_b(b5, H4_P),
            pad_w(w6, H4_P, D_OUT_P), pad_b(b6, D_OUT_P))


# ----------------------------------------------------------------------------
# Wrapper: grid over batch tiles; weights/biases are full-array resident
# blocks (they total ~1 MiB bf16, trivially VMEM-resident on v5e/v6e/v7x).
# ----------------------------------------------------------------------------
@functools.partial(jax.jit, static_argnames=("batch_tile",))
def ae_forward(x, params, *, batch_tile=256):
    B, D_in = x.shape
    assert D_in == 500

    # Effective tile: MXU-friendly, but never larger than the (padded) batch.
    bt = min(batch_tile, _round_up(B, 16))
    bt = _round_up(bt, 16)
    B_pad = _round_up(B, bt)

    # Pad & cast input once (zero pad rows / feature columns: exact).
    x_p = jnp.pad(x, ((0, B_pad - B), (0, D_IN_P - D_in))).astype(jnp.bfloat16)
    pp = _pad_params(params)

    def x_map(i):
        return (i, 0)

    def full_map(i):
        return (0, 0)

    weight_specs = [pl.BlockSpec(p.shape, full_map) for p in pp]

    grid = (B_pad // bt,)

    # Advisory cost estimate.
    flops_per_row = 2 * (D_IN_P * H1_P + H1_P * H2_P + H2_P * LAT_P
                         + LAT_P * H3_P + H3_P * H4_P + H4_P * D_OUT_P)
    weight_bytes = sum(int(p.size) * p.dtype.itemsize for p in pp)
    bytes_accessed = B_pad * (D_IN_P * 2 + LAT_P * 4 + D_OUT_P * 4) + weight_bytes
    cost = pl.CostEstimate(flops=B_pad * flops_per_row,
                           transcendentals=0,
                           bytes_accessed=bytes_accessed)

    enc_p, dec_p = pl.pallas_call(
        ae_kernel,
        out_shape=(
            jax.ShapeDtypeStruct((B_pad, LAT_P), jnp.float32),
            jax.ShapeDtypeStruct((B_pad, D_OUT_P), jnp.float32),
        ),
        grid_spec=pltpu.PrefetchScalarGridSpec(
            num_scalar_prefetch=0,
            grid=grid,
            in_specs=[pl.BlockSpec((bt, D_IN_P), x_map)] + weight_specs,
            out_specs=[
                pl.BlockSpec((bt, LAT_P), x_map),
                pl.BlockSpec((bt, D_OUT_P), x_map),
            ],
        ),
        compiler_params=pltpu.CompilerParams(
            dimension_semantics=("parallel",),
        ),
        cost_estimate=cost,
    )(x_p, *pp)

    # Slice back to the logical (unpadded) shapes.
    enc = enc_p[:B, :20]
    dec = dec_p[:B, :500]
    return enc, dec


# ----------------------------------------------------------------------------
# Deterministic parameter init (mimics torch.nn.Linear default uniform init).
# Weights stored as (in_features, out_features); biases as (1, out_features).
# ----------------------------------------------------------------------------
def init_params(key):
    dims = [(500, 300), (300, 128), (128, 20),   # encoder
            (20, 128), (128, 300), (300, 500)]   # decoder
    params = []
    for (d_in, d_out) in dims:
        key, kw, kb = jax.random.split(key, 3)
        bound = 1.0 / jnp.sqrt(d_in)
        w = jax.random.uniform(kw, (d_in, d_out), jnp.float32, -bound, bound)
        b = jax.random.uniform(kb, (1, d_out), jnp.float32, -bound, bound)
        params.extend([w, b])
    return tuple(params)


def ae_reference(x, params):
    (w1, b1, w2, b2, w3, b3, w4, b4, w5, b5, w6, b6) = params
    h = jax.nn.relu(x @ w1 + b1)
    h = jax.nn.relu(h @ w2 + b2)
    enc = h @ w3 + b3
    h = jax.nn.relu(enc @ w4 + b4)
    h = jax.nn.relu(h @ w5 + b5)
    dec = h @ w6 + b6
    return enc, dec


if __name__ == "__main__":
    key = jax.random.PRNGKey(0)
    k_params, k_x = jax.random.split(key)

    params = init_params(k_params)
    batch = 16
    x = jax.random.normal(k_x, (batch, 500), jnp.float32)

    enc, dec = ae_forward(x, params, batch_tile=256)
    jax.block_until_ready((enc, dec))

    # sanity-check against plain-JAX f32 reference (kernel matmuls are bf16,
    # so use a relative-norm tolerance rather than tight elementwise allclose)
    enc_ref, dec_ref = ae_reference(x, params)
    assert enc.shape == (batch, 20) and dec.shape == (batch, 500)

    def rel_err(a, b):
        return float(jnp.linalg.norm(a - b) / (jnp.linalg.norm(b) + 1e-12))

    assert rel_err(enc, enc_ref) < 5e-2, rel_err(enc, enc_ref)
    assert rel_err(dec, dec_ref) < 5e-2, rel_err(dec, dec_ref)

    print("KERNEL_OK")
</pallas_src>

<mosaic_0001>
module attributes {stable_mosaic.version = 11 : i64} {
  func.func @ae_kernel(%arg0: i32, %arg1: memref<16x512xbf16, #tpu.memory_space<vmem>>, %arg2: memref<512x384xbf16, #tpu.memory_space<vmem>>, %arg3: memref<1x384xf32, #tpu.memory_space<vmem>>, %arg4: memref<384x128xbf16, #tpu.memory_space<vmem>>, %arg5: memref<1x128xf32, #tpu.memory_space<vmem>>, %arg6: memref<128x128xbf16, #tpu.memory_space<vmem>>, %arg7: memref<1x128xf32, #tpu.memory_space<vmem>>, %arg8: memref<128x128xbf16, #tpu.memory_space<vmem>>, %arg9: memref<1x128xf32, #tpu.memory_space<vmem>>, %arg10: memref<128x384xbf16, #tpu.memory_space<vmem>>, %arg11: memref<1x384xf32, #tpu.memory_space<vmem>>, %arg12: memref<384x512xbf16, #tpu.memory_space<vmem>>, %arg13: memref<1x512xf32, #tpu.memory_space<vmem>>, %arg14: memref<16x128xf32, #tpu.memory_space<vmem>>, %arg15: memref<16x512xf32, #tpu.memory_space<vmem>>) attributes {dimension_semantics = [#tpu.dimension_semantics<parallel>], iteration_bounds = array<i64: 1>, scalar_prefetch = 0 : i64, scratch_operands = 0 : i64, tpu.core_type = #tpu.core_type<tc>, window_params = [{transform_indices = @transform_0, window_bounds = array<i64: 16, 512>}, {pipeline_mode = #tpu.pipeline_mode<synchronous>, transform_indices = @transform_1, window_bounds = array<i64: 512, 384>}, {pipeline_mode = #tpu.pipeline_mode<synchronous>, transform_indices = @transform_2, window_bounds = array<i64: 1, 384>}, {pipeline_mode = #tpu.pipeline_mode<synchronous>, transform_indices = @transform_3, window_bounds = array<i64: 384, 128>}, {pipeline_mode = #tpu.pipeline_mode<synchronous>, transform_indices = @transform_4, window_bounds = array<i64: 1, 128>}, {pipeline_mode = #tpu.pipeline_mode<synchronous>, transform_indices = @transform_5, window_bounds = array<i64: 128, 128>}, {pipeline_mode = #tpu.pipeline_mode<synchronous>, transform_indices = @transform_6, window_bounds = array<i64: 1, 128>}, {pipeline_mode = #tpu.pipeline_mode<synchronous>, transform_indices = @transform_7, window_bounds = array<i64: 128, 128>}, {pipeline_mode = #tpu.pipeline_mode<synchronous>, transform_indices = @transform_8, window_bounds = array<i64: 1, 128>}, {pipeline_mode = #tpu.pipeline_mode<synchronous>, transform_indices = @transform_9, window_bounds = array<i64: 128, 384>}, {pipeline_mode = #tpu.pipeline_mode<synchronous>, transform_indices = @transform_10, window_bounds = array<i64: 1, 384>}, {pipeline_mode = #tpu.pipeline_mode<synchronous>, transform_indices = @transform_11, window_bounds = array<i64: 384, 512>}, {pipeline_mode = #tpu.pipeline_mode<synchronous>, transform_indices = @transform_12, window_bounds = array<i64: 1, 512>}, {transform_indices = @transform_13, window_bounds = array<i64: 16, 128>}, {transform_indices = @transform_14, window_bounds = array<i64: 16, 512>}]} {
    %c0 = arith.constant 0 : index
    %c0_0 = arith.constant 0 : index
    %0 = vector.load %arg1[%c0, %c0_0] : memref<16x512xbf16, #tpu.memory_space<vmem>>, vector<16x512xbf16>
    %c0_1 = arith.constant 0 : index
    %c0_2 = arith.constant 0 : index
    %1 = vector.load %arg2[%c0_1, %c0_2] : memref<512x384xbf16, #tpu.memory_space<vmem>>, vector<512x384xbf16>
    %cst = arith.constant dense<0.000000e+00> : vector<16x384xf32>
    %2 = tpu.matmul %0, %1, %cst {dimension_numbers = #tpu.dot_dimension_numbers<[1], [0], [0], [1], [0, 0, 1, 1], [], []>} : vector<16x512xbf16>, vector<512x384xbf16>, vector<16x384xf32> -> vector<16x384xf32>
    %c0_3 = arith.constant 0 : index
    %c0_4 = arith.constant 0 : index
    %3 = vector.load %arg3[%c0_3, %c0_4] : memref<1x384xf32, #tpu.memory_space<vmem>>, vector<1x384xf32>
    %4 = vector.broadcast %3 : vector<1x384xf32> to vector<16x384xf32>
    %5 = arith.addf %2, %4 : vector<16x384xf32>
    %cst_5 = arith.constant 0.000000e+00 : f32
    %6 = vector.broadcast %cst_5 : f32 to vector<16x384xf32>
    %7 = arith.maximumf %5, %6 : vector<16x384xf32>
    %8 = arith.truncf %7 : vector<16x384xf32> to vector<16x384xbf16>
    %c0_6 = arith.constant 0 : index
    %c0_7 = arith.constant 0 : index
    %9 = vector.load %arg4[%c0_6, %c0_7] : memref<384x128xbf16, #tpu.memory_space<vmem>>, vector<384x128xbf16>
    %cst_8 = arith.constant dense<0.000000e+00> : vector<16x128xf32>
    %10 = tpu.matmul %8, %9, %cst_8 {dimension_numbers = #tpu.dot_dimension_numbers<[1], [0], [0], [1], [0, 0, 1, 1], [], []>} : vector<16x384xbf16>, vector<384x128xbf16>, vector<16x128xf32> -> vector<16x128xf32>
    %c0_9 = arith.constant 0 : index
    %c0_10 = arith.constant 0 : index
    %11 = vector.load %arg5[%c0_9, %c0_10] : memref<1x128xf32, #tpu.memory_space<vmem>>, vector<1x128xf32>
    %12 = vector.broadcast %11 : vector<1x128xf32> to vector<16x128xf32>
    %13 = arith.addf %10, %12 : vector<16x128xf32>
    %cst_11 = arith.constant 0.000000e+00 : f32
    %14 = vector.broadcast %cst_11 : f32 to vector<16x128xf32>
    %15 = arith.maximumf %13, %14 : vector<16x128xf32>
    %16 = arith.truncf %15 : vector<16x128xf32> to vector<16x128xbf16>
    %c0_12 = arith.constant 0 : index
    %c0_13 = arith.constant 0 : index
    %17 = vector.load %arg6[%c0_12, %c0_13] : memref<128x128xbf16, #tpu.memory_space<vmem>>, vector<128x128xbf16>
    %cst_14 = arith.constant dense<0.000000e+00> : vector<16x128xf32>
    %18 = tpu.matmul %16, %17, %cst_14 {dimension_numbers = #tpu.dot_dimension_numbers<[1], [0], [0], [1], [0, 0, 1, 1], [], []>} : vector<16x128xbf16>, vector<128x128xbf16>, vector<16x128xf32> -> vector<16x128xf32>
    %c0_15 = arith.constant 0 : index
    %c0_16 = arith.constant 0 : index
    %19 = vector.load %arg7[%c0_15, %c0_16] : memref<1x128xf32, #tpu.memory_space<vmem>>, vector<1x128xf32>
    %20 = vector.broadcast %19 : vector<1x128xf32> to vector<16x128xf32>
    %21 = arith.addf %18, %20 : vector<16x128xf32>
    %c0_17 = arith.constant 0 : index
    %c0_18 = arith.constant 0 : index
    %22 = vector.load %arg14[%c0_17, %c0_18] : memref<16x128xf32, #tpu.memory_space<vmem>>, vector<16x128xf32>
    tpu.vector_store %arg14[%c0_17, %c0_18], %21 {strides = array<i32>} : memref<16x128xf32, #tpu.memory_space<vmem>>, vector<16x128xf32>,
    %23 = arith.truncf %21 : vector<16x128xf32> to vector<16x128xbf16>
    %c0_19 = arith.constant 0 : index
    %c0_20 = arith.constant 0 : index
    %24 = vector.load %arg8[%c0_19, %c0_20] : memref<128x128xbf16, #tpu.memory_space<vmem>>, vector<128x128xbf16>
    %cst_21 = arith.constant dense<0.000000e+00> : vector<16x128xf32>
    %25 = tpu.matmul %23, %24, %cst_21 {dimension_numbers = #tpu.dot_dimension_numbers<[1], [0], [0], [1], [0, 0, 1, 1], [], []>} : vector<16x128xbf16>, vector<128x128xbf16>, vector<16x128xf32> -> vector<16x128xf32>
    %c0_22 = arith.constant 0 : index
    %c0_23 = arith.constant 0 : index
    %26 = vector.load %arg9[%c0_22, %c0_23] : memref<1x128xf32, #tpu.memory_space<vmem>>, vector<1x128xf32>
    %27 = vector.broadcast %26 : vector<1x128xf32> to vector<16x128xf32>
    %28 = arith.addf %25, %27 : vector<16x128xf32>
    %cst_24 = arith.constant 0.000000e+00 : f32
    %29 = vector.broadcast %cst_24 : f32 to vector<16x128xf32>
    %30 = arith.maximumf %28, %29 : vector<16x128xf32>
    %31 = arith.truncf %30 : vector<16x128xf32> to vector<16x128xbf16>
    %c0_25 = arith.constant 0 : index
    %c0_26 = arith.constant 0 : index
    %32 = vector.load %arg10[%c0_25, %c0_26] : memref<128x384xbf16, #tpu.memory_space<vmem>>, vector<128x384xbf16>
    %cst_27 = arith.constant dense<0.000000e+00> : vector<16x384xf32>
    %33 = tpu.matmul %31, %32, %cst_27 {dimension_numbers = #tpu.dot_dimension_numbers<[1], [0], [0], [1], [0, 0, 1, 1], [], []>} : vector<16x128xbf16>, vector<128x384xbf16>, vector<16x384xf32> -> vector<16x384xf32>
    %c0_28 = arith.constant 0 : index
    %c0_29 = arith.constant 0 : index
    %34 = vector.load %arg11[%c0_28, %c0_29] : memref<1x384xf32, #tpu.memory_space<vmem>>, vector<1x384xf32>
    %35 = vector.broadcast %34 : vector<1x384xf32> to vector<16x384xf32>
    %36 = arith.addf %33, %35 : vector<16x384xf32>
    %cst_30 = arith.constant 0.000000e+00 : f32
    %37 = vector.broadcast %cst_30 : f32 to vector<16x384xf32>
    %38 = arith.maximumf %36, %37 : vector<16x384xf32>
    %39 = arith.truncf %38 : vector<16x384xf32> to vector<16x384xbf16>
    %c0_31 = arith.constant 0 : index
    %c0_32 = arith.constant 0 : index
    %40 = vector.load %arg12[%c0_31, %c0_32] : memref<384x512xbf16, #tpu.memory_space<vmem>>, vector<384x512xbf16>
    %cst_33 = arith.constant dense<0.000000e+00> : vector<16x512xf32>
    %41 = tpu.matmul %39, %40, %cst_33 {dimension_numbers = #tpu.dot_dimension_numbers<[1], [0], [0], [1], [0, 0, 1, 1], [], []>} : vector<16x384xbf16>, vector<384x512xbf16>, vector<16x512xf32> -> vector<16x512xf32>
    %c0_34 = arith.constant 0 : index
    %c0_35 = arith.constant 0 : index
    %42 = vector.load %arg13[%c0_34, %c0_35] : memref<1x512xf32, #tpu.memory_space<vmem>>, vector<1x512xf32>
    %43 = vector.broadcast %42 : vector<1x512xf32> to vector<16x512xf32>
    %44 = arith.addf %41, %43 : vector<16x512xf32>
    %c0_36 = arith.constant 0 : index
    %c0_37 = arith.constant 0 : index
    %45 = vector.load %arg15[%c0_36, %c0_37] : memref<16x512xf32, #tpu.memory_space<vmem>>, vector<16x512xf32>
    tpu.vector_store %arg15[%c0_36, %c0_37], %44 {strides = array<i32>} : memref<16x512xf32, #tpu.memory_space<vmem>>, vector<16x512xf32>,
    return
  }
  func.func @transform_0(%arg0: i32) -> (i32, i32) {
    %c0_i32 = arith.constant 0 : i32
    %c0_i32_0 = arith.constant 0 : i32
    return %arg0, %c0_i32 : i32, i32
  }
  func.func @transform_1(%arg0: i32) -> (i32, i32) {
    %c0_i32 = arith.constant 0 : i32
    %c0_i32_0 = arith.constant 0 : i32
    %c0_i32_1 = arith.constant 0 : i32
    return %c0_i32, %c0_i32_0 : i32, i32
  }
  func.func @transform_2(%arg0: i32) -> (i32, i32) {
    %c0_i32 = arith.constant 0 : i32
    %c0_i32_0 = arith.constant 0 : i32
    %c0_i32_1 = arith.constant 0 : i32
    return %c0_i32, %c0_i32_0 : i32, i32
  }
  func.func @transform_3(%arg0: i32) -> (i32, i32) {
    %c0_i32 = arith.constant 0 : i32
    %c0_i32_0 = arith.constant 0 : i32
    %c0_i32_1 = arith.constant 0 : i32
    return %c0_i32, %c0_i32_0 : i32, i32
  }
  func.func @transform_4(%arg0: i32) -> (i32, i32) {
    %c0_i32 = arith.constant 0 : i32
    %c0_i32_0 = arith.constant 0 : i32
    %c0_i32_1 = arith.constant 0 : i32
    return %c0_i32, %c0_i32_0 : i32, i32
  }
  func.func @transform_5(%arg0: i32) -> (i32, i32) {
    %c0_i32 = arith.constant 0 : i32
    %c0_i32_0 = arith.constant 0 : i32
    %c0_i32_1 = arith.constant 0 : i32
    return %c0_i32, %c0_i32_0 : i32, i32
  }
  func.func @transform_6(%arg0: i32) -> (i32, i32) {
    %c0_i32 = arith.constant 0 : i32
    %c0_i32_0 = arith.constant 0 : i32
    %c0_i32_1 = arith.constant 0 : i32
    return %c0_i32, %c0_i32_0 : i32, i32
  }
  func.func @transform_7(%arg0: i32) -> (i32, i32) {
    %c0_i32 = arith.constant 0 : i32
    %c0_i32_0 = arith.constant 0 : i32
    %c0_i32_1 = arith.constant 0 : i32
    return %c0_i32, %c0_i32_0 : i32, i32
  }
  func.func @transform_8(%arg0: i32) -> (i32, i32) {
    %c0_i32 = arith.constant 0 : i32
    %c0_i32_0 = arith.constant 0 : i32
    %c0_i32_1 = arith.constant 0 : i32
    return %c0_i32, %c0_i32_0 : i32, i32
  }
  func.func @transform_9(%arg0: i32) -> (i32, i32) {
    %c0_i32 = arith.constant 0 : i32
    %c0_i32_0 = arith.constant 0 : i32
    %c0_i32_1 = arith.constant 0 : i32
    return %c0_i32, %c0_i32_0 : i32, i32
  }
  func.func @transform_10(%arg0: i32) -> (i32, i32) {
    %c0_i32 = arith.constant 0 : i32
    %c0_i32_0 = arith.constant 0 : i32
    %c0_i32_1 = arith.constant 0 : i32
    return %c0_i32, %c0_i32_0 : i32, i32
  }
  func.func @transform_11(%arg0: i32) -> (i32, i32) {
    %c0_i32 = arith.constant 0 : i32
    %c0_i32_0 = arith.constant 0 : i32
    %c0_i32_1 = arith.constant 0 : i32
    return %c0_i32, %c0_i32_0 : i32, i32
  }
  func.func @transform_12(%arg0: i32) -> (i32, i32) {
    %c0_i32 = arith.constant 0 : i32
    %c0_i32_0 = arith.constant 0 : i32
    %c0_i32_1 = arith.constant 0 : i32
    return %c0_i32, %c0_i32_0 : i32, i32
  }
  func.func @transform_13(%arg0: i32) -> (i32, i32) {
    %c0_i32 = arith.constant 0 : i32
    %c0_i32_0 = arith.constant 0 : i32
    return %arg0, %c0_i32 : i32, i32
  }
  func.func @transform_14(%arg0: i32) -> (i32, i32) {
    %c0_i32 = arith.constant 0 : i32
    %c0_i32_0 = arith.constant 0 : i32
    return %arg0, %c0_i32 : i32, i32
  }
}

</mosaic_0001>

<llo_original>
// kernel: ae_forward.1
$region0: #{ae_forward.1}
  #allocation0 [shape = 'u32[]', space=smem, size = 0x4, offset = 0x4, fixed_abs, tag = 'smem constant byte address 0x4 - core index']
  #allocation1 [shape = 'u32[144,128]{1,0:T(1,128)}', space=vmem, size = 0x12000, scoped, tag = 'internal scratch']
  %s0 = inlined_call_operand.vmem [shape: bf16[16,512], index: 0, kind: input, shape index: {}]
  %s1 = inlined_call_operand.vmem [shape: bf16[512,384], index: 1, kind: input, shape index: {}]
  %s2 = inlined_call_operand.vmem [shape: f32[1,384], index: 2, kind: input, shape index: {}]
  %s3 = inlined_call_operand.vmem [shape: bf16[384,128], index: 3, kind: input, shape index: {}]
  %s4 = inlined_call_operand.vmem [shape: f32[1,128], index: 4, kind: input, shape index: {}]
  %s5 = inlined_call_operand.vmem [shape: bf16[128,128], index: 5, kind: input, shape index: {}]
  %s6 = inlined_call_operand.vmem [shape: f32[1,128], index: 6, kind: input, shape index: {}]
  %s7 = inlined_call_operand.vmem [shape: bf16[128,128], index: 7, kind: input, shape index: {}]
  %s8 = inlined_call_operand.vmem [shape: f32[1,128], index: 8, kind: input, shape index: {}]
  %s9 = inlined_call_operand.vmem [shape: bf16[128,384], index: 9, kind: input, shape index: {}]
  %s10 = inlined_call_operand.vmem [shape: f32[1,384], index: 10, kind: input, shape index: {}]
  %s11 = inlined_call_operand.vmem [shape: bf16[384,512], index: 11, kind: input, shape index: {}]
  %s12 = inlined_call_operand.vmem [shape: f32[1,512], index: 12, kind: input, shape index: {}]
  %s13 = inlined_call_operand.hbm [shape: f32[16,128], index: 13, kind: output, shape index: {0}]
  %s14 = inlined_call_operand.hbm [shape: f32[16,512], index: 14, kind: output, shape index: {1}]
  %15 = xla_tuple %s13, %s14
  %s16 = sld [smem:[#allocation0]]
  $region70: #{ae_forward.1} parent=0
    _
  %s18 = ssub.s32 1, %s16
  %s19 = scalar_select 0, %s18, %s16
  $region1: #{ae_forward.1} parent=0
    #allocation2 [shape = 'u8[8192]{0}', space=vmem, size = 0x2000, scoped, tag = 'output window, operand 0, single buffered']
    #allocation3 [shape = 's32[1]{0}', space=sflag, size = 0x4, scoped, tag = 'scoped memory for ae_forward.1']
    #allocation4 [shape = 'u8[32768]{0}', space=vmem, size = 0x8000, scoped, tag = 'output window, operand 1, single buffered']
    #allocation5 [shape = 's32[1]{0}', space=sflag, size = 0x4, scoped, tag = 'scoped memory for ae_forward.1']
    %20 = vsyncpa [#allocation3], 0
    %21 = vsyncpa [#allocation5], 0
    // Predicated region
    $region2: #{ae_forward.1} parent=1 // pred_check
      _
    $region3: #{ae_forward.1} parent=1 // pred_check_branch
      %23 = sbr.rel (0) target = $region5
    $region4: #{ae_forward.1} parent=1 // pred_region
      _
    $region5: #{ae_forward.1} parent=1 // pred_fallthru
      _
    // Predicated region
    $region6: #{ae_forward.1} parent=1 // pred_check
      _
    $region7: #{ae_forward.1} parent=1 // pred_check_branch
      %25 = sbr.rel (0) target = $region9
    $region8: #{ae_forward.1} parent=1 // pred_region
      _
    $region9: #{ae_forward.1} parent=1 // pred_fallthru
      _
    // Predicated region
    $region10: #{ae_forward.1} parent=1 // pred_check
      _
    $region11: #{ae_forward.1} parent=1 // pred_check_branch
      %27 = sbr.rel (0) target = $region13
    $region12: #{ae_forward.1} parent=1 // pred_region
      _
    $region13: #{ae_forward.1} parent=1 // pred_fallthru
      _
    // Predicated region
    $region14: #{ae_forward.1} parent=1 // pred_check
      _
    $region15: #{ae_forward.1} parent=1 // pred_check_branch
      %29 = sbr.rel (0) target = $region17
    $region16: #{ae_forward.1} parent=1 // pred_region
      _
    $region17: #{ae_forward.1} parent=1 // pred_fallthru
      _
    // Predicated region
    $region18: #{ae_forward.1} parent=1 // pred_check
      _
    $region19: #{ae_forward.1} parent=1 // pred_check_branch
      %31 = sbr.rel (0) target = $region21
    $region20: #{ae_forward.1} parent=1 // pred_region
      _
    $region21: #{ae_forward.1} parent=1 // pred_fallthru
      _
    // Predicated region
    $region22: #{ae_forward.1} parent=1 // pred_check
      _
    $region23: #{ae_forward.1} parent=1 // pred_check_branch
      %33 = sbr.rel (0) target = $region25
    $region24: #{ae_forward.1} parent=1 // pred_region
      _
    $region25: #{ae_forward.1} parent=1 // pred_fallthru
      _
    // Predicated region
    $region26: #{ae_forward.1} parent=1 // pred_check
      _
    $region27: #{ae_forward.1} parent=1 // pred_check_branch
      %35 = sbr.rel (0) target = $region29
    $region28: #{ae_forward.1} parent=1 // pred_region
      _
    $region29: #{ae_forward.1} parent=1 // pred_fallthru
      _
    // Predicated region
    $region30: #{ae_forward.1} parent=1 // pred_check
      _
    $region31: #{ae_forward.1} parent=1 // pred_check_branch
      %37 = sbr.rel (0) target = $region33
    $region32: #{ae_forward.1} parent=1 // pred_region
      _
    $region33: #{ae_forward.1} parent=1 // pred_fallthru
      _
    // Predicated region
    $region34: #{ae_forward.1} parent=1 // pred_check
      _
    $region35: #{ae_forward.1} parent=1 // pred_check_branch
      %39 = sbr.rel (0) target = $region37
    $region36: #{ae_forward.1} parent=1 // pred_region
      _
    $region37: #{ae_forward.1} parent=1 // pred_fallthru
      _
    // Predicated region
    $region38: #{ae_forward.1} parent=1 // pred_check
      _
    $region39: #{ae_forward.1} parent=1 // pred_check_branch
      %41 = sbr.rel (0) target = $region41
    $region40: #{ae_forward.1} parent=1 // pred_region
      _
    $region41: #{ae_forward.1} parent=1 // pred_fallthru
      _
    // Predicated region
    $region42: #{ae_forward.1} parent=1 // pred_check
      _
    $region43: #{ae_forward.1} parent=1 // pred_check_branch
      %43 = sbr.rel (0) target = $region45
    $region44: #{ae_forward.1} parent=1 // pred_region
      _
    $region45: #{ae_forward.1} parent=1 // pred_fallthru
      _
    // Predicated region
    $region46: #{ae_forward.1} parent=1 // pred_check
      _
    $region47: #{ae_forward.1} parent=1 // pred_check_branch
      %45 = sbr.rel (0) target = $region49
    $region48: #{ae_forward.1} parent=1 // pred_region
      _
    $region49: #{ae_forward.1} parent=1 // pred_fallthru
      _
    // Predicated region
    $region50: #{ae_forward.1} parent=1 // pred_check
      _
    $region51: #{ae_forward.1} parent=1 // pred_check_branch
      %47 = sbr.rel (0) target = $region53
    $region52: #{ae_forward.1} parent=1 // pred_region
      _
    $region53: #{ae_forward.1} parent=1 // pred_fallthru
      _
    %v49 = vld [vmem:[%s0] sm:$0xff]
    %v50 = vld [vmem:[%s0 + $0x8] sm:$0xff]
    %v51 = vld [vmem:[%s0 + $0x10] sm:$0xff]
    %v52 = vld [vmem:[%s0 + $0x18] sm:$0xff]
    %v53 = vld [vmem:[%s1] sm:$0xff]
    %v54 = vld [vmem:[%s1 + $0x8] sm:$0xf]
    %v55 = vld [vmem:[%s1 + $0xc] sm:$0xff]
    %v56 = vld [vmem:[%s1 + $0x14] sm:$0xf]
    %v57 = vld [vmem:[%s1 + $0x18] sm:$0xff]
    %v58 = vld [vmem:[%s1 + $0x20] sm:$0xf]
    %v59 = vld [vmem:[%s1 + $0x24] sm:$0xff]
    %v60 = vld [vmem:[%s1 + $0x2c] sm:$0xf]
    %v61 = vld [vmem:[%s1 + $0x30] sm:$0xff]
    %v62 = vld [vmem:[%s1 + $0x38] sm:$0xf]
    %v63 = vld [vmem:[%s1 + $0x3c] sm:$0xff]
    %v64 = vld [vmem:[%s1 + $0x44] sm:$0xf]
    %v65 = vld [vmem:[%s1 + $0x48] sm:$0xff]
    %v66 = vld [vmem:[%s1 + $0x50] sm:$0xf]
    %v67 = vld [vmem:[%s1 + $0x54] sm:$0xff]
    %v68 = vld [vmem:[%s1 + $0x5c] sm:$0xf]
    %v69 = vld [vmem:[%s1 + $0x60] sm:$0xff]
    %v70 = vld [vmem:[%s1 + $0x68] sm:$0xf]
    %v71 = vld [vmem:[%s1 + $0x6c] sm:$0xff]
    %v72 = vld [vmem:[%s1 + $0x74] sm:$0xf]
    %v73 = vld [vmem:[%s1 + $0x78] sm:$0xff]
    %v74 = vld [vmem:[%s1 + $0x80] sm:$0xf]
    %v75 = vld [vmem:[%s1 + $0x84] sm:$0xff]
    %v76 = vld [vmem:[%s1 + $0x8c] sm:$0xf]
    %v77 = vld [vmem:[%s1 + $0x90] sm:$0xff]
    %v78 = vld [vmem:[%s1 + $0x98] sm:$0xf]
    %v79 = vld [vmem:[%s1 + $0x9c] sm:$0xff]
    %v80 = vld [vmem:[%s1 + $0xa4] sm:$0xf]
    %v81 = vld [vmem:[%s1 + $0xa8] sm:$0xff]
    %v82 = vld [vmem:[%s1 + $0xb0] sm:$0xf]
    %v83 = vld [vmem:[%s1 + $0xb4] sm:$0xff]
    %v84 = vld [vmem:[%s1 + $0xbc] sm:$0xf]
    %v85 = vld [vmem:[%s1 + $0xc0] sm:$0xff]
    %v86 = vld [vmem:[%s1 + $0xc8] sm:$0xf]
    %v87 = vld [vmem:[%s1 + $0xcc] sm:$0xff]
    %v88 = vld [vmem:[%s1 + $0xd4] sm:$0xf]
    %v89 = vld [vmem:[%s1 + $0xd8] sm:$0xff]
    %v90 = vld [vmem:[%s1 + $0xe0] sm:$0xf]
    %v91 = vld [vmem:[%s1 + $0xe4] sm:$0xff]
    %v92 = vld [vmem:[%s1 + $0xec] sm:$0xf]
    %v93 = vld [vmem:[%s1 + $0xf0] sm:$0xff]
    %v94 = vld [vmem:[%s1 + $0xf8] sm:$0xf]
    %v95 = vld [vmem:[%s1 + $0xfc] sm:$0xff]
    %v96 = vld [vmem:[%s1 + $0x104] sm:$0xf]
    %v97 = vld [vmem:[%s1 + $0x108] sm:$0xff]
    %v98 = vld [vmem:[%s1 + $0x110] sm:$0xf]
    %v99 = vld [vmem:[%s1 + $0x114] sm:$0xff]
    %v100 = vld [vmem:[%s1 + $0x11c] sm:$0xf]
    %v101 = vld [vmem:[%s1 + $0x120] sm:$0xff]
    %v102 = vld [vmem:[%s1 + $0x128] sm:$0xf]
    %v103 = vld [vmem:[%s1 + $0x12c] sm:$0xff]
    %v104 = vld [vmem:[%s1 + $0x134] sm:$0xf]
    %v105 = vld [vmem:[%s1 + $0x138] sm:$0xff]
    %v106 = vld [vmem:[%s1 + $0x140] sm:$0xf]
    %v107 = vld [vmem:[%s1 + $0x144] sm:$0xff]
    %v108 = vld [vmem:[%s1 + $0x14c] sm:$0xf]
    %v109 = vld [vmem:[%s1 + $0x150] sm:$0xff]
    %v110 = vld [vmem:[%s1 + $0x158] sm:$0xf]
    %v111 = vld [vmem:[%s1 + $0x15c] sm:$0xff]
    %v112 = vld [vmem:[%s1 + $0x164] sm:$0xf]
    %v113 = vld [vmem:[%s1 + $0x168] sm:$0xff]
    %v114 = vld [vmem:[%s1 + $0x170] sm:$0xf]
    %v115 = vld [vmem:[%s1 + $0x174] sm:$0xff]
    %v116 = vld [vmem:[%s1 + $0x17c] sm:$0xf]
    %v117 = vld [vmem:[%s1 + $0x180] sm:$0xff]
    %v118 = vld [vmem:[%s1 + $0x188] sm:$0xf]
    %v119 = vld [vmem:[%s1 + $0x18c] sm:$0xff]
    %v120 = vld [vmem:[%s1 + $0x194] sm:$0xf]
    %v121 = vld [vmem:[%s1 + $0x198] sm:$0xff]
    %v122 = vld [vmem:[%s1 + $0x1a0] sm:$0xf]
    %v123 = vld [vmem:[%s1 + $0x1a4] sm:$0xff]
    %v124 = vld [vmem:[%s1 + $0x1ac] sm:$0xf]
    %v125 = vld [vmem:[%s1 + $0x1b0] sm:$0xff]
    %v126 = vld [vmem:[%s1 + $0x1b8] sm:$0xf]
    %v127 = vld [vmem:[%s1 + $0x1bc] sm:$0xff]
    %v128 = vld [vmem:[%s1 + $0x1c4] sm:$0xf]
    %v129 = vld [vmem:[%s1 + $0x1c8] sm:$0xff]
    %v130 = vld [vmem:[%s1 + $0x1d0] sm:$0xf]
    %v131 = vld [vmem:[%s1 + $0x1d4] sm:$0xff]
    %v132 = vld [vmem:[%s1 + $0x1dc] sm:$0xf]
    %v133 = vld [vmem:[%s1 + $0x1e0] sm:$0xff]
    %v134 = vld [vmem:[%s1 + $0x1e8] sm:$0xf]
    %v135 = vld [vmem:[%s1 + $0x1ec] sm:$0xff]
    %v136 = vld [vmem:[%s1 + $0x1f4] sm:$0xf]
    %v137 = vld [vmem:[%s1 + $0x1f8] sm:$0xff]
    %v138 = vld [vmem:[%s1 + $0x200] sm:$0xf]
    %v139 = vld [vmem:[%s1 + $0x204] sm:$0xff]
    %v140 = vld [vmem:[%s1 + $0x20c] sm:$0xf]
    %v141 = vld [vmem:[%s1 + $0x210] sm:$0xff]
    %v142 = vld [vmem:[%s1 + $0x218] sm:$0xf]
    %v143 = vld [vmem:[%s1 + $0x21c] sm:$0xff]
    %v144 = vld [vmem:[%s1 + $0x224] sm:$0xf]
    %v145 = vld [vmem:[%s1 + $0x228] sm:$0xff]
    %v146 = vld [vmem:[%s1 + $0x230] sm:$0xf]
    %v147 = vld [vmem:[%s1 + $0x234] sm:$0xff]
    %v148 = vld [vmem:[%s1 + $0x23c] sm:$0xf]
    %v149 = vld [vmem:[%s1 + $0x240] sm:$0xff]
    %v150 = vld [vmem:[%s1 + $0x248] sm:$0xf]
    %v151 = vld [vmem:[%s1 + $0x24c] sm:$0xff]
    %v152 = vld [vmem:[%s1 + $0x254] sm:$0xf]
    %v153 = vld [vmem:[%s1 + $0x258] sm:$0xff]
    %v154 = vld [vmem:[%s1 + $0x260] sm:$0xf]
    %v155 = vld [vmem:[%s1 + $0x264] sm:$0xff]
    %v156 = vld [vmem:[%s1 + $0x26c] sm:$0xf]
    %v157 = vld [vmem:[%s1 + $0x270] sm:$0xff]
    %v158 = vld [vmem:[%s1 + $0x278] sm:$0xf]
    %v159 = vld [vmem:[%s1 + $0x27c] sm:$0xff]
    %v160 = vld [vmem:[%s1 + $0x284] sm:$0xf]
    %v161 = vld [vmem:[%s1 + $0x288] sm:$0xff]
    %v162 = vld [vmem:[%s1 + $0x290] sm:$0xf]
    %v163 = vld [vmem:[%s1 + $0x294] sm:$0xff]
    %v164 = vld [vmem:[%s1 + $0x29c] sm:$0xf]
    %v165 = vld [vmem:[%s1 + $0x2a0] sm:$0xff]
    %v166 = vld [vmem:[%s1 + $0x2a8] sm:$0xf]
    %v167 = vld [vmem:[%s1 + $0x2ac] sm:$0xff]
    %v168 = vld [vmem:[%s1 + $0x2b4] sm:$0xf]
    %v169 = vld [vmem:[%s1 + $0x2b8] sm:$0xff]
    %v170 = vld [vmem:[%s1 + $0x2c0] sm:$0xf]
    %v171 = vld [vmem:[%s1 + $0x2c4] sm:$0xff]
    %v172 = vld [vmem:[%s1 + $0x2cc] sm:$0xf]
    %v173 = vld [vmem:[%s1 + $0x2d0] sm:$0xff]
    %v174 = vld [vmem:[%s1 + $0x2d8] sm:$0xf]
    %v175 = vld [vmem:[%s1 + $0x2dc] sm:$0xff]
    %v176 = vld [vmem:[%s1 + $0x2e4] sm:$0xf]
    %v177 = vld [vmem:[%s1 + $0x2e8] sm:$0xff]
    %v178 = vld [vmem:[%s1 + $0x2f0] sm:$0xf]
    %v179 = vld [vmem:[%s1 + $0x2f4] sm:$0xff]
    %v180 = vld [vmem:[%s1 + $0x2fc] sm:$0xf]
    %v181 = vld [vmem:[%s2] sm:$0x7]
    %v183 = vlaneseq
    %v184 = vshrl.u32 %v183, 7
    %v185 = vsub.s32 0, %v184
    %v186 = vrot.slane %v181, %v185
    %v187 = vlaneseq
    %v188 = vshrl.u32 %v187, 7
    %v189 = vsub.s32 1, %v188
    %v190 = vrot.slane %v181, %v189
    %v191 = vlaneseq
    %v192 = vshrl.u32 %v191, 7
    %v193 = vsub.s32 2, %v192
    %v194 = vrot.slane %v181, %v193
    %v202 = vunpack.c.l.b16 %v49
    %v203 = vunpack.c.h.b16 %v49
    %v204 = vunpack.c.l.b16 %v50
    %v205 = vunpack.c.h.b16 %v50
    %v206 = vunpack.c.l.b16 %v51
    %v207 = vunpack.c.h.b16 %v51
    %v208 = vunpack.c.l.b16 %v52
    %v209 = vunpack.c.h.b16 %v52
    %v210 = vpack.c.b16 %v206, %v202
    %v211 = vpack.c.b16 %v207, %v203
    %v212 = vpack.c.b16 %v208, %v204
    %v213 = vpack.c.b16 %v209, %v205
    %v346 = vunpack.c.l.b16 %v53
    %v347 = vunpack.c.h.b16 %v53
    %v348 = vunpack.c.l.b16 %v54
    %v349 = vunpack.c.l.b16 %v55
    %v350 = vunpack.c.h.b16 %v55
    %v351 = vunpack.c.l.b16 %v56
    %v352 = vunpack.c.l.b16 %v57
    %v353 = vunpack.c.h.b16 %v57
    %v354 = vunpack.c.l.b16 %v58
    %v355 = vunpack.c.l.b16 %v59
    %v356 = vunpack.c.h.b16 %v59
    %v357 = vunpack.c.l.b16 %v60
    %v358 = vunpack.c.l.b16 %v61
    %v359 = vunpack.c.h.b16 %v61
    %v360 = vunpack.c.l.b16 %v62
    %v361 = vunpack.c.l.b16 %v63
    %v362 = vunpack.c.h.b16 %v63
    %v363 = vunpack.c.l.b16 %v64
    %v364 = vunpack.c.l.b16 %v65
    %v365 = vunpack.c.h.b16 %v65
    %v366 = vunpack.c.l.b16 %v66
    %v367 = vunpack.c.l.b16 %v67
    %v368 = vunpack.c.h.b16 %v67
    %v369 = vunpack.c.l.b16 %v68
    %v370 = vunpack.c.l.b16 %v69
    %v371 = vunpack.c.h.b16 %v69
    %v372 = vunpack.c.l.b16 %v70
    %v373 = vunpack.c.l.b16 %v71
    %v374 = vunpack.c.h.b16 %v71
    %v375 = vunpack.c.l.b16 %v72
    %v376 = vunpack.c.l.b16 %v73
    %v377 = vunpack.c.h.b16 %v73
    %v378 = vunpack.c.l.b16 %v74
    %v379 = vunpack.c.l.b16 %v75
    %v380 = vunpack.c.h.b16 %v75
    %v381 = vunpack.c.l.b16 %v76
    %v382 = vunpack.c.l.b16 %v77
    %v383 = vunpack.c.h.b16 %v77
    %v384 = vunpack.c.l.b16 %v78
    %v385 = vunpack.c.l.b16 %v79
    %v386 = vunpack.c.h.b16 %v79
    %v387 = vunpack.c.l.b16 %v80
    %v388 = vunpack.c.l.b16 %v81
    %v389 = vunpack.c.h.b16 %v81
    %v390 = vunpack.c.l.b16 %v82
    %v391 = vunpack.c.l.b16 %v83
    %v392 = vunpack.c.h.b16 %v83
    %v393 = vunpack.c.l.b16 %v84
    %v394 = vunpack.c.l.b16 %v85
    %v395 = vunpack.c.h.b16 %v85
    %v396 = vunpack.c.l.b16 %v86
    %v397 = vunpack.c.l.b16 %v87
    %v398 = vunpack.c.h.b16 %v87
    %v399 = vunpack.c.l.b16 %v88
    %v400 = vunpack.c.l.b16 %v89
    %v401 = vunpack.c.h.b16 %v89
    %v402 = vunpack.c.l.b16 %v90
    %v403 = vunpack.c.l.b16 %v91
    %v404 = vunpack.c.h.b16 %v91
    %v405 = vunpack.c.l.b16 %v92
    %v406 = vunpack.c.l.b16 %v93
    %v407 = vunpack.c.h.b16 %v93
    %v408 = vunpack.c.l.b16 %v94
    %v409 = vunpack.c.l.b16 %v95
    %v410 = vunpack.c.h.b16 %v95
    %v411 = vunpack.c.l.b16 %v96
    %v412 = vunpack.c.l.b16 %v97
    %v413 = vunpack.c.h.b16 %v97
    %v414 = vunpack.c.l.b16 %v98
    %v415 = vunpack.c.l.b16 %v99
    %v416 = vunpack.c.h.b16 %v99
    %v417 = vunpack.c.l.b16 %v100
    %v418 = vunpack.c.l.b16 %v101
    %v419 = vunpack.c.h.b16 %v101
    %v420 = vunpack.c.l.b16 %v102
    %v421 = vunpack.c.l.b16 %v103
    %v422 = vunpack.c.h.b16 %v103
    %v423 = vunpack.c.l.b16 %v104
    %v424 = vunpack.c.l.b16 %v105
    %v425 = vunpack.c.h.b16 %v105
    %v426 = vunpack.c.l.b16 %v106
    %v427 = vunpack.c.l.b16 %v107
    %v428 = vunpack.c.h.b16 %v107
    %v429 = vunpack.c.l.b16 %v108
    %v430 = vunpack.c.l.b16 %v109
    %v431 = vunpack.c.h.b16 %v109
    %v432 = vunpack.c.l.b16 %v110
    %v433 = vunpack.c.l.b16 %v111
    %v434 = vunpack.c.h.b16 %v111
    %v435 = vunpack.c.l.b16 %v112
    %v436 = vunpack.c.l.b16 %v113
    %v437 = vunpack.c.h.b16 %v113
    %v438 = vunpack.c.l.b16 %v114
    %v439 = vunpack.c.l.b16 %v115
    %v440 = vunpack.c.h.b16 %v115
    %v441 = vunpack.c.l.b16 %v116
    %v442 = vunpack.c.l.b16 %v117
    %v443 = vunpack.c.h.b16 %v117
    %v444 = vunpack.c.l.b16 %v118
    %v445 = vunpack.c.l.b16 %v119
    %v446 = vunpack.c.h.b16 %v119
    %v447 = vunpack.c.l.b16 %v120
    %v448 = vunpack.c.l.b16 %v121
    %v449 = vunpack.c.h.b16 %v121
    %v450 = vunpack.c.l.b16 %v122
    %v451 = vunpack.c.l.b16 %v123
    %v452 = vunpack.c.h.b16 %v123
    %v453 = vunpack.c.l.b16 %v124
    %v454 = vunpack.c.l.b16 %v125
    %v455 = vunpack.c.h.b16 %v125
    %v456 = vunpack.c.l.b16 %v126
    %v457 = vunpack.c.l.b16 %v127
    %v458 = vunpack.c.h.b16 %v127
    %v459 = vunpack.c.l.b16 %v128
    %v460 = vunpack.c.l.b16 %v129
    %v461 = vunpack.c.h.b16 %v129
    %v462 = vunpack.c.l.b16 %v130
    %v463 = vunpack.c.l.b16 %v131
    %v464 = vunpack.c.h.b16 %v131
    %v465 = vunpack.c.l.b16 %v132
    %v466 = vunpack.c.l.b16 %v133
    %v467 = vunpack.c.h.b16 %v133
    %v468 = vunpack.c.l.b16 %v134
    %v469 = vunpack.c.l.b16 %v135
    %v470 = vunpack.c.h.b16 %v135
    %v471 = vunpack.c.l.b16 %v136
    %v472 = vunpack.c.l.b16 %v137
    %v473 = vunpack.c.h.b16 %v137
    %v474 = vunpack.c.l.b16 %v138
    %v475 = vunpack.c.l.b16 %v139
    %v476 = vunpack.c.h.b16 %v139
    %v477 = vunpack.c.l.b16 %v140
    %v478 = vunpack.c.l.b16 %v141
    %v479 = vunpack.c.h.b16 %v141
    %v480 = vunpack.c.l.b16 %v142
    %v481 = vunpack.c.l.b16 %v143
    %v482 = vunpack.c.h.b16 %v143
    %v483 = vunpack.c.l.b16 %v144
    %v484 = vunpack.c.l.b16 %v145
    %v485 = vunpack.c.h.b16 %v145
    %v486 = vunpack.c.l.b16 %v146
    %v487 = vunpack.c.l.b16 %v147
    %v488 = vunpack.c.h.b16 %v147
    %v489 = vunpack.c.l.b16 %v148
    %v490 = vunpack.c.l.b16 %v149
    %v491 = vunpack.c.h.b16 %v149
    %v492 = vunpack.c.l.b16 %v150
    %v493 = vunpack.c.l.b16 %v151
    %v494 = vunpack.c.h.b16 %v151
    %v495 = vunpack.c.l.b16 %v152
    %v496 = vunpack.c.l.b16 %v153
    %v497 = vunpack.c.h.b16 %v153
    %v498 = vunpack.c.l.b16 %v154
    %v499 = vunpack.c.l.b16 %v155
    %v500 = vunpack.c.h.b16 %v155
    %v501 = vunpack.c.l.b16 %v156
    %v502 = vunpack.c.l.b16 %v157
    %v503 = vunpack.c.h.b16 %v157
    %v504 = vunpack.c.l.b16 %v158
    %v505 = vunpack.c.l.b16 %v159
    %v506 = vunpack.c.h.b16 %v159
    %v507 = vunpack.c.l.b16 %v160
    %v508 = vunpack.c.l.b16 %v161
    %v509 = vunpack.c.h.b16 %v161
    %v510 = vunpack.c.l.b16 %v162
    %v511 = vunpack.c.l.b16 %v163
    %v512 = vunpack.c.h.b16 %v163
    %v513 = vunpack.c.l.b16 %v164
    %v514 = vunpack.c.l.b16 %v165
    %v515 = vunpack.c.h.b16 %v165
    %v516 = vunpack.c.l.b16 %v166
    %v517 = vunpack.c.l.b16 %v167
    %v518 = vunpack.c.h.b16 %v167
    %v519 = vunpack.c.l.b16 %v168
    %v520 = vunpack.c.l.b16 %v169
    %v521 = vunpack.c.h.b16 %v169
    %v522 = vunpack.c.l.b16 %v170
    %v523 = vunpack.c.l.b16 %v171
    %v524 = vunpack.c.h.b16 %v171
    %v525 = vunpack.c.l.b16 %v172
    %v526 = vunpack.c.l.b16 %v173
    %v527 = vunpack.c.h.b16 %v173
    %v528 = vunpack.c.l.b16 %v174
    %v529 = vunpack.c.l.b16 %v175
    %v530 = vunpack.c.h.b16 %v175
    %v531 = vunpack.c.l.b16 %v176
    %v532 = vunpack.c.l.b16 %v177
    %v533 = vunpack.c.h.b16 %v177
    %v534 = vunpack.c.l.b16 %v178
    %v535 = vunpack.c.l.b16 %v179
    %v536 = vunpack.c.h.b16 %v179
    %v537 = vunpack.c.l.b16 %v180
    %v538 = vpack.c.b16 %v349, %v346
    %v539 = vpack.c.b16 %v350, %v347
    %v540 = vpack.c.b16 %v351, %v348
    %v541 = vpack.c.b16 %v355, %v352
    %v542 = vpack.c.b16 %v356, %v353
    %v543 = vpack.c.b16 %v357, %v354
    %v544 = vpack.c.b16 %v361, %v358
    %v545 = vpack.c.b16 %v362, %v359
    %v546 = vpack.c.b16 %v363, %v360
    %v547 = vpack.c.b16 %v367, %v364
    %v548 = vpack.c.b16 %v368, %v365
    %v549 = vpack.c.b16 %v369, %v366
    %v550 = vpack.c.b16 %v373, %v370
    %v551 = vpack.c.b16 %v374, %v371
    %v552 = vpack.c.b16 %v375, %v372
    %v553 = vpack.c.b16 %v379, %v376
    %v554 = vpack.c.b16 %v380, %v377
    %v555 = vpack.c.b16 %v381, %v378
    %v556 = vpack.c.b16 %v385, %v382
    %v557 = vpack.c.b16 %v386, %v383
    %v558 = vpack.c.b16 %v387, %v384
    %v559 = vpack.c.b16 %v391, %v388
    %v560 = vpack.c.b16 %v392, %v389
    %v561 = vpack.c.b16 %v393, %v390
    %v562 = vpack.c.b16 %v397, %v394
    %v563 = vpack.c.b16 %v398, %v395
    %v564 = vpack.c.b16 %v399, %v396
    %v565 = vpack.c.b16 %v403, %v400
    %v566 = vpack.c.b16 %v404, %v401
    %v567 = vpack.c.b16 %v405, %v402
    %v568 = vpack.c.b16 %v409, %v406
    %v569 = vpack.c.b16 %v410, %v407
    %v570 = vpack.c.b16 %v411, %v408
    %v571 = vpack.c.b16 %v415, %v412
    %v572 = vpack.c.b16 %v416, %v413
    %v573 = vpack.c.b16 %v417, %v414
    %v574 = vpack.c.b16 %v421, %v418
    %v575 = vpack.c.b16 %v422, %v419
    %v576 = vpack.c.b16 %v423, %v420
    %v577 = vpack.c.b16 %v427, %v424
    %v578 = vpack.c.b16 %v428, %v425
    %v579 = vpack.c.b16 %v429, %v426
    %v580 = vpack.c.b16 %v433, %v430
    %v581 = vpack.c.b16 %v434, %v431
    %v582 = vpack.c.b16 %v435, %v432
    %v583 = vpack.c.b16 %v439, %v436
    %v584 = vpack.c.b16 %v440, %v437
    %v585 = vpack.c.b16 %v441, %v438
    %v586 = vpack.c.b16 %v445, %v442
    %v587 = vpack.c.b16 %v446, %v443
    %v588 = vpack.c.b16 %v447, %v444
    %v589 = vpack.c.b16 %v451, %v448
    %v590 = vpack.c.b16 %v452, %v449
    %v591 = vpack.c.b16 %v453, %v450
    %v592 = vpack.c.b16 %v457, %v454
    %v593 = vpack.c.b16 %v458, %v455
    %v594 = vpack.c.b16 %v459, %v456
    %v595 = vpack.c.b16 %v463, %v460
    %v596 = vpack.c.b16 %v464, %v461
    %v597 = vpack.c.b16 %v465, %v462
    %v598 = vpack.c.b16 %v469, %v466
    %v599 = vpack.c.b16 %v470, %v467
    %v600 = vpack.c.b16 %v471, %v468
    %v601 = vpack.c.b16 %v475, %v472
    %v602 = vpack.c.b16 %v476, %v473
    %v603 = vpack.c.b16 %v477, %v474
    %v604 = vpack.c.b16 %v481, %v478
    %v605 = vpack.c.b16 %v482, %v479
    %v606 = vpack.c.b16 %v483, %v480
    %v607 = vpack.c.b16 %v487, %v484
    %v608 = vpack.c.b16 %v488, %v485
    %v609 = vpack.c.b16 %v489, %v486
    %v610 = vpack.c.b16 %v493, %v490
    %v611 = vpack.c.b16 %v494, %v491
    %v612 = vpack.c.b16 %v495, %v492
    %v613 = vpack.c.b16 %v499, %v496
    %v614 = vpack.c.b16 %v500, %v497
    %v615 = vpack.c.b16 %v501, %v498
    %v616 = vpack.c.b16 %v505, %v502
    %v617 = vpack.c.b16 %v506, %v503
    %v618 = vpack.c.b16 %v507, %v504
    %v619 = vpack.c.b16 %v511, %v508
    %v620 = vpack.c.b16 %v512, %v509
    %v621 = vpack.c.b16 %v513, %v510
    %v622 = vpack.c.b16 %v517, %v514
    %v623 = vpack.c.b16 %v518, %v515
    %v624 = vpack.c.b16 %v519, %v516
    %v625 = vpack.c.b16 %v523, %v520
    %v626 = vpack.c.b16 %v524, %v521
    %v627 = vpack.c.b16 %v525, %v522
    %v628 = vpack.c.b16 %v529, %v526
    %v629 = vpack.c.b16 %v530, %v527
    %v630 = vpack.c.b16 %v531, %v528
    %v631 = vpack.c.b16 %v535, %v532
    %v632 = vpack.c.b16 %v536, %v533
    %v633 = vpack.c.b16 %v537, %v534
    %730 = vmatprep.subr.bf16.mxu0 %v539
    %731 = vmatpush1.bf16.msra.mxu0 %v538
    %732 = vmatprep.subr.bf16.mxu0 %v542
    %733 = vmatpush1.bf16.msra.mxu0 %v541
    %734 = vmatprep.subr.bf16.mxu0 %v545
    %735 = vmatpush1.bf16.msra.mxu0 %v544
    %736 = vmatprep.subr.bf16.mxu0 %v548
    %737 = vmatpush1.bf16.msra.mxu0 %v547
    %738 = vmatprep.subr.bf16.mxu0 %v551
    %739 = vmatpush1.bf16.msra.mxu0 %v550
    %740 = vmatprep.subr.bf16.mxu0 %v554
    %741 = vmatpush1.bf16.msra.mxu0 %v553
    %742 = vmatprep.subr.bf16.mxu0 %v557
    %743 = vmatpush1.bf16.msra.mxu0 %v556
    %744 = vmatprep.subr.bf16.mxu0 %v560
    %745 = vmatpush1.bf16.msra.mxu0 %v559
    %746 = vmatprep.subr.bf16.mxu0 %v563
    %747 = vmatpush1.bf16.msra.mxu0 %v562
    %748 = vmatprep.subr.bf16.mxu0 %v566
    %749 = vmatpush1.bf16.msra.mxu0 %v565
    %750 = vmatprep.subr.bf16.mxu0 %v569
    %751 = vmatpush1.bf16.msra.mxu0 %v568
    %752 = vmatprep.subr.bf16.mxu0 %v572
    %753 = vmatpush1.bf16.msra.mxu0 %v571
    %754 = vmatprep.subr.bf16.mxu0 %v575
    %755 = vmatpush1.bf16.msra.mxu0 %v574
    %756 = vmatprep.subr.bf16.mxu0 %v578
    %757 = vmatpush1.bf16.msra.mxu0 %v577
    %758 = vmatprep.subr.bf16.mxu0 %v581
    %759 = vmatpush1.bf16.msra.mxu0 %v580
    %760 = vmatprep.subr.bf16.mxu0 %v584
    %761 = vmatpush1.bf16.msra.mxu0 %v583
    %762 = vmatprep.mubr.bf16.mxu0 %v211
    %763 = vmatmul.mubr.bf16.gmra.mrb[0].mxu0 %v210
    %v764 = vpop.f32.mrb[0].mxu0
    %v765 = vadd.f32 %v186, %v764
    %v766 = vpop.f32.mrb[0].mxu0
    %v767 = vadd.f32 %v190, %v766
    %v768 = vpop.f32.mrb[0].mxu0
    %v769 = vadd.f32 %v186, %v768
    %v770 = vpop.f32.mrb[0].mxu0
    %v771 = vadd.f32 %v190, %v770
    %772 = vdwg.mxu0
    %773 = vmatprep.subr.bf16.mxu0 %v587
    %774 = vmatpush1.bf16.msra.mxu0 %v586
    %775 = vmatprep.subr.bf16.mxu0 %v590
    %776 = vmatpush1.bf16.msra.mxu0 %v589
    %777 = vmatprep.subr.bf16.mxu0 %v593
    %778 = vmatpush1.bf16.msra.mxu0 %v592
    %779 = vmatprep.subr.bf16.mxu0 %v596
    %780 = vmatpush1.bf16.msra.mxu0 %v595
    %781 = vmatprep.subr.bf16.mxu0 %v599
    %782 = vmatpush1.bf16.msra.mxu0 %v598
    %783 = vmatprep.subr.bf16.mxu0 %v602
    %784 = vmatpush1.bf16.msra.mxu0 %v601
    %785 = vmatprep.subr.bf16.mxu0 %v605
    %786 = vmatpush1.bf16.msra.mxu0 %v604
    %787 = vmatprep.subr.bf16.mxu0 %v608
    %788 = vmatpush1.bf16.msra.mxu0 %v607
    %789 = vmatprep.subr.bf16.mxu0 %v611
    %790 = vmatpush1.bf16.msra.mxu0 %v610
    %791 = vmatprep.subr.bf16.mxu0 %v614
    %792 = vmatpush1.bf16.msra.mxu0 %v613
    %793 = vmatprep.subr.bf16.mxu0 %v617
    %794 = vmatpush1.bf16.msra.mxu0 %v616
    %795 = vmatprep.subr.bf16.mxu0 %v620
    %796 = vmatpush1.bf16.msra.mxu0 %v619
    %797 = vmatprep.subr.bf16.mxu0 %v623
    %798 = vmatpush1.bf16.msra.mxu0 %v622
    %799 = vmatprep.subr.bf16.mxu0 %v626
    %800 = vmatpush1.bf16.msra.mxu0 %v625
    %801 = vmatprep.subr.bf16.mxu0 %v629
    %802 = vmatpush1.bf16.msra.mxu0 %v628
    %803 = vmatprep.subr.bf16.mxu0 %v632
    %804 = vmatpush1.bf16.msra.mxu0 %v631
    %805 = vmatprep.mubr.bf16.mxu0 %v213
    %806 = vmatmul.mubr.bf16.gmra.mrb[0].mxu0 %v212
    %v807 = vpop.f32.mrb[0].mxu0
    %v808 = vadd.f32 %v765, %v807
    %v809 = vpop.f32.mrb[0].mxu0
    %v810 = vadd.f32 %v767, %v809
    %v811 = vpop.f32.mrb[0].mxu0
    %v812 = vadd.f32 %v769, %v811
    %v813 = vpop.f32.mrb[0].mxu0
    %v814 = vadd.f32 %v771, %v813
    %815 = vdwg.mxu0
    %816 = vmatprep.subr.bf16.mxu0 0
    %817 = vmatpush1.bf16.msra.mxu0 %v540
    %818 = vmatprep.subr.bf16.mxu0 0
    %819 = vmatpush1.bf16.msra.mxu0 %v543
    %820 = vmatprep.subr.bf16.mxu0 0
    %821 = vmatpush1.bf16.msra.mxu0 %v546
    %822 = vmatprep.subr.bf16.mxu0 0
    %823 = vmatpush1.bf16.msra.mxu0 %v549
    %824 = vmatprep.subr.bf16.mxu0 0
    %825 = vmatpush1.bf16.msra.mxu0 %v552
    %826 = vmatprep.subr.bf16.mxu0 0
    %827 = vmatpush1.bf16.msra.mxu0 %v555
    %828 = vmatprep.subr.bf16.mxu0 0
    %829 = vmatpush1.bf16.msra.mxu0 %v558
    %830 = vmatprep.subr.bf16.mxu0 0
    %831 = vmatpush1.bf16.msra.mxu0 %v561
    %832 = vmatprep.subr.bf16.mxu0 0
    %833 = vmatpush1.bf16.msra.mxu0 %v564
    %834 = vmatprep.subr.bf16.mxu0 0
    %835 = vmatpush1.bf16.msra.mxu0 %v567
    %836 = vmatprep.subr.bf16.mxu0 0
    %837 = vmatpush1.bf16.msra.mxu0 %v570
    %838 = vmatprep.subr.bf16.mxu0 0
    %839 = vmatpush1.bf16.msra.mxu0 %v573
    %840 = vmatprep.subr.bf16.mxu0 0
    %841 = vmatpush1.bf16.msra.mxu0 %v576
    %842 = vmatprep.subr.bf16.mxu0 0
    %843 = vmatpush1.bf16.msra.mxu0 %v579
    %844 = vmatprep.subr.bf16.mxu0 0
    %845 = vmatpush1.bf16.msra.mxu0 %v582
    %846 = vmatprep.subr.bf16.mxu0 0
    %847 = vmatpush1.bf16.msra.mxu0 %v585
    %848 = vmatprep.mubr.bf16.mxu0 %v211
    %849 = vmatmul.mubr.bf16.gmra.mrb[0].mxu0 %v210
    %v850 = vpop.f32.mrb[0].mxu0
    %v851 = vadd.f32 %v194, %v850
    %v852 = vpop.f32.mrb[0].mxu0
    %v853 = vpop.f32.mrb[0].mxu0
    %v854 = vadd.f32 %v194, %v853
    %v855 = vpop.f32.mrb[0].mxu0
    %856 = vdwg.mxu0
    %857 = vmatprep.subr.bf16.mxu0 0
    %858 = vmatpush1.bf16.msra.mxu0 %v588
    %859 = vmatprep.subr.bf16.mxu0 0
    %860 = vmatpush1.bf16.msra.mxu0 %v591
    %861 = vmatprep.subr.bf16.mxu0 0
    %862 = vmatpush1.bf16.msra.mxu0 %v594
    %863 = vmatprep.subr.bf16.mxu0 0
    %864 = vmatpush1.bf16.msra.mxu0 %v597
    %865 = vmatprep.subr.bf16.mxu0 0
    %866 = vmatpush1.bf16.msra.mxu0 %v600
    %867 = vmatprep.subr.bf16.mxu0 0
    %868 = vmatpush1.bf16.msra.mxu0 %v603
    %869 = vmatprep.subr.bf16.mxu0 0
    %870 = vmatpush1.bf16.msra.mxu0 %v606
    %871 = vmatprep.subr.bf16.mxu0 0
    %872 = vmatpush1.bf16.msra.mxu0 %v609
    %873 = vmatprep.subr.bf16.mxu0 0
    %874 = vmatpush1.bf16.msra.mxu0 %v612
    %875 = vmatprep.subr.bf16.mxu0 0
    %876 = vmatpush1.bf16.msra.mxu0 %v615
    %877 = vmatprep.subr.bf16.mxu0 0
    %878 = vmatpush1.bf16.msra.mxu0 %v618
    %879 = vmatprep.subr.bf16.mxu0 0
    %880 = vmatpush1.bf16.msra.mxu0 %v621
    %881 = vmatprep.subr.bf16.mxu0 0
    %882 = vmatpush1.bf16.msra.mxu0 %v624
    %883 = vmatprep.subr.bf16.mxu0 0
    %884 = vmatpush1.bf16.msra.mxu0 %v627
    %885 = vmatprep.subr.bf16.mxu0 0
    %886 = vmatpush1.bf16.msra.mxu0 %v630
    %887 = vmatprep.subr.bf16.mxu0 0
    %888 = vmatpush1.bf16.msra.mxu0 %v633
    %889 = vmatprep.mubr.bf16.mxu0 %v213
    %890 = vmatmul.mubr.bf16.gmra.mrb[0].mxu0 %v212
    %v891 = vpop.f32.mrb[0].mxu0
    %v892 = vadd.f32 %v851, %v891
    %v893 = vpop.f32.mrb[0].mxu0
    %v894 = vpop.f32.mrb[0].mxu0
    %v895 = vadd.f32 %v854, %v894
    %v896 = vpop.f32.mrb[0].mxu0
    %897 = vdwg.mxu0
    %v898 = vmax.f32 %v808, 0.0
    %v899 = vmax.f32 %v810, 0.0
    %v900 = vmax.f32 %v892, 0.0
    %v901 = vmax.f32 %v812, 0.0
    %v902 = vmax.f32 %v814, 0.0
    %v903 = vmax.f32 %v895, 0.0
    %v904 = vpack.c.bf16 %v901, %v898
    %v905 = vpack.c.bf16 %v902, %v899
    %v906 = vpack.c.bf16 %v903, %v900
    %v907 = vld [vmem:[%s3] sm:$0xf]
    %v908 = vld [vmem:[%s3 + $0x4] sm:$0xf]
    %v909 = vld [vmem:[%s3 + $0x8] sm:$0xf]
    %v910 = vld [vmem:[%s3 + $0xc] sm:$0xf]
    %v911 = vld [vmem:[%s3 + $0x10] sm:$0xf]
    %v912 = vld [vmem:[%s3 + $0x14] sm:$0xf]
    %v913 = vld [vmem:[%s3 + $0x18] sm:$0xf]
    %v914 = vld [vmem:[%s3 + $0x1c] sm:$0xf]
    %v915 = vld [vmem:[%s3 + $0x20] sm:$0xf]
    %v916 = vld [vmem:[%s3 + $0x24] sm:$0xf]
    %v917 = vld [vmem:[%s3 + $0x28] sm:$0xf]
    %v918 = vld [vmem:[%s3 + $0x2c] sm:$0xf]
    %v919 = vld [vmem:[%s3 + $0x30] sm:$0xf]
    %v920 = vld [vmem:[%s3 + $0x34] sm:$0xf]
    %v921 = vld [vmem:[%s3 + $0x38] sm:$0xf]
    %v922 = vld [vmem:[%s3 + $0x3c] sm:$0xf]
    %v923 = vld [vmem:[%s3 + $0x40] sm:$0xf]
    %v924 = vld [vmem:[%s3 + $0x44] sm:$0xf]
    %v925 = vld [vmem:[%s3 + $0x48] sm:$0xf]
    %v926 = vld [vmem:[%s3 + $0x4c] sm:$0xf]
    %v927 = vld [vmem:[%s3 + $0x50] sm:$0xf]
    %v928 = vld [vmem:[%s3 + $0x54] sm:$0xf]
    %v929 = vld [vmem:[%s3 + $0x58] sm:$0xf]
    %v930 = vld [vmem:[%s3 + $0x5c] sm:$0xf]
    %v931 = vld [vmem:[%s3 + $0x60] sm:$0xf]
    %v932 = vld [vmem:[%s3 + $0x64] sm:$0xf]
    %v933 = vld [vmem:[%s3 + $0x68] sm:$0xf]
    %v934 = vld [vmem:[%s3 + $0x6c] sm:$0xf]
    %v935 = vld [vmem:[%s3 + $0x70] sm:$0xf]
    %v936 = vld [vmem:[%s3 + $0x74] sm:$0xf]
    %v937 = vld [vmem:[%s3 + $0x78] sm:$0xf]
    %v938 = vld [vmem:[%s3 + $0x7c] sm:$0xf]
    %v939 = vld [vmem:[%s3 + $0x80] sm:$0xf]
    %v940 = vld [vmem:[%s3 + $0x84] sm:$0xf]
    %v941 = vld [vmem:[%s3 + $0x88] sm:$0xf]
    %v942 = vld [vmem:[%s3 + $0x8c] sm:$0xf]
    %v943 = vld [vmem:[%s3 + $0x90] sm:$0xf]
    %v944 = vld [vmem:[%s3 + $0x94] sm:$0xf]
    %v945 = vld [vmem:[%s3 + $0x98] sm:$0xf]
    %v946 = vld [vmem:[%s3 + $0x9c] sm:$0xf]
    %v947 = vld [vmem:[%s3 + $0xa0] sm:$0xf]
    %v948 = vld [vmem:[%s3 + $0xa4] sm:$0xf]
    %v949 = vld [vmem:[%s3 + $0xa8] sm:$0xf]
    %v950 = vld [vmem:[%s3 + $0xac] sm:$0xf]
    %v951 = vld [vmem:[%s3 + $0xb0] sm:$0xf]
    %v952 = vld [vmem:[%s3 + $0xb4] sm:$0xf]
    %v953 = vld [vmem:[%s3 + $0xb8] sm:$0xf]
    %v954 = vld [vmem:[%s3 + $0xbc] sm:$0xf]
    %v955 = vld [vmem:[%s4] sm:$0x1]
    %v957 = vlaneseq
    %v958 = vshrl.u32 %v957, 7
    %v959 = vsub.s32 0, %v958
    %v960 = vrot.slane %v955, %v959
    %v1010 = vunpack.c.l.b16 %v907
    %v1011 = vunpack.c.l.b16 %v908
    %v1012 = vunpack.c.l.b16 %v909
    %v1013 = vunpack.c.l.b16 %v910
    %v1014 = vunpack.c.l.b16 %v911
    %v1015 = vunpack.c.l.b16 %v912
    %v1016 = vunpack.c.l.b16 %v913
    %v1017 = vunpack.c.l.b16 %v914
    %v1018 = vunpack.c.l.b16 %v915
    %v1019 = vunpack.c.l.b16 %v916
    %v1020 = vunpack.c.l.b16 %v917
    %v1021 = vunpack.c.l.b16 %v918
    %v1022 = vunpack.c.l.b16 %v919
    %v1023 = vunpack.c.l.b16 %v920
    %v1024 = vunpack.c.l.b16 %v921
    %v1025 = vunpack.c.l.b16 %v922
    %v1026 = vunpack.c.l.b16 %v923
    %v1027 = vunpack.c.l.b16 %v924
    %v1028 = vunpack.c.l.b16 %v925
    %v1029 = vunpack.c.l.b16 %v926
    %v1030 = vunpack.c.l.b16 %v927
    %v1031 = vunpack.c.l.b16 %v928
    %v1032 = vunpack.c.l.b16 %v929
    %v1033 = vunpack.c.l.b16 %v930
    %v1034 = vunpack.c.l.b16 %v931
    %v1035 = vunpack.c.l.b16 %v932
    %v1036 = vunpack.c.l.b16 %v933
    %v1037 = vunpack.c.l.b16 %v934
    %v1038 = vunpack.c.l.b16 %v935
    %v1039 = vunpack.c.l.b16 %v936
    %v1040 = vunpack.c.l.b16 %v937
    %v1041 = vunpack.c.l.b16 %v938
    %v1042 = vunpack.c.l.b16 %v939
    %v1043 = vunpack.c.l.b16 %v940
    %v1044 = vunpack.c.l.b16 %v941
    %v1045 = vunpack.c.l.b16 %v942
    %v1046 = vunpack.c.l.b16 %v943
    %v1047 = vunpack.c.l.b16 %v944
    %v1048 = vunpack.c.l.b16 %v945
    %v1049 = vunpack.c.l.b16 %v946
    %v1050 = vunpack.c.l.b16 %v947
    %v1051 = vunpack.c.l.b16 %v948
    %v1052 = vunpack.c.l.b16 %v949
    %v1053 = vunpack.c.l.b16 %v950
    %v1054 = vunpack.c.l.b16 %v951
    %v1055 = vunpack.c.l.b16 %v952
    %v1056 = vunpack.c.l.b16 %v953
    %v1057 = vunpack.c.l.b16 %v954
    %v1058 = vpack.c.b16 %v1011, %v1010
    %v1059 = vpack.c.b16 %v1013, %v1012
    %v1060 = vpack.c.b16 %v1015, %v1014
    %v1061 = vpack.c.b16 %v1017, %v1016
    %v1062 = vpack.c.b16 %v1019, %v1018
    %v1063 = vpack.c.b16 %v1021, %v1020
    %v1064 = vpack.c.b16 %v1023, %v1022
    %v1065 = vpack.c.b16 %v1025, %v1024
    %v1066 = vpack.c.b16 %v1027, %v1026
    %v1067 = vpack.c.b16 %v1029, %v1028
    %v1068 = vpack.c.b16 %v1031, %v1030
    %v1069 = vpack.c.b16 %v1033, %v1032
    %v1070 = vpack.c.b16 %v1035, %v1034
    %v1071 = vpack.c.b16 %v1037, %v1036
    %v1072 = vpack.c.b16 %v1039, %v1038
    %v1073 = vpack.c.b16 %v1041, %v1040
    %v1074 = vpack.c.b16 %v1043, %v1042
    %v1075 = vpack.c.b16 %v1045, %v1044
    %v1076 = vpack.c.b16 %v1047, %v1046
    %v1077 = vpack.c.b16 %v1049, %v1048
    %v1078 = vpack.c.b16 %v1051, %v1050
    %v1079 = vpack.c.b16 %v1053, %v1052
    %v1080 = vpack.c.b16 %v1055, %v1054
    %v1081 = vpack.c.b16 %v1057, %v1056
    %1106 = vmatprep.subr.bf16.mxu0 0
    %1107 = vmatpush1.bf16.msra.mxu0 %v1058
    %1108 = vmatprep.subr.bf16.mxu0 0
    %1109 = vmatpush1.bf16.msra.mxu0 %v1059
    %1110 = vmatprep.subr.bf16.mxu0 0
    %1111 = vmatpush1.bf16.msra.mxu0 %v1060
    %1112 = vmatprep.subr.bf16.mxu0 0
    %1113 = vmatpush1.bf16.msra.mxu0 %v1061
    %1114 = vmatprep.subr.bf16.mxu0 0
    %1115 = vmatpush1.bf16.msra.mxu0 %v1062
    %1116 = vmatprep.subr.bf16.mxu0 0
    %1117 = vmatpush1.bf16.msra.mxu0 %v1063
    %1118 = vmatprep.subr.bf16.mxu0 0
    %1119 = vmatpush1.bf16.msra.mxu0 %v1064
    %1120 = vmatprep.subr.bf16.mxu0 0
    %1121 = vmatpush1.bf16.msra.mxu0 %v1065
    %1122 = vmatprep.subr.bf16.mxu0 0
    %1123 = vmatpush1.bf16.msra.mxu0 %v1066
    %1124 = vmatprep.subr.bf16.mxu0 0
    %1125 = vmatpush1.bf16.msra.mxu0 %v1067
    %1126 = vmatprep.subr.bf16.mxu0 0
    %1127 = vmatpush1.bf16.msra.mxu0 %v1068
    %1128 = vmatprep.subr.bf16.mxu0 0
    %1129 = vmatpush1.bf16.msra.mxu0 %v1069
    %1130 = vmatprep.subr.bf16.mxu0 0
    %1131 = vmatpush1.bf16.msra.mxu0 %v1070
    %1132 = vmatprep.subr.bf16.mxu0 0
    %1133 = vmatpush1.bf16.msra.mxu0 %v1071
    %1134 = vmatprep.subr.bf16.mxu0 0
    %1135 = vmatpush1.bf16.msra.mxu0 %v1072
    %1136 = vmatprep.subr.bf16.mxu0 0
    %1137 = vmatpush1.bf16.msra.mxu0 %v1073
    %1138 = vmatprep.mubr.bf16.mxu0 %v905
    %1139 = vmatmul.mubr.bf16.gmra.mrb[0].mxu0 %v904
    %v1140 = vpop.f32.mrb[0].mxu0
    %v1141 = vadd.f32 %v960, %v1140
    %v1142 = vpop.f32.mrb[0].mxu0
    %v1143 = vpop.f32.mrb[0].mxu0
    %v1144 = vadd.f32 %v960, %v1143
    %v1145 = vpop.f32.mrb[0].mxu0
    %1146 = vdwg.mxu0
    %1147 = vmatprep.subr.bf16.mxu0 0
    %1148 = vmatpush1.bf16.msra.mxu0 %v1074
    %1149 = vmatprep.subr.bf16.mxu0 0
    %1150 = vmatpush1.bf16.msra.mxu0 %v1075
    %1151 = vmatprep.subr.bf16.mxu0 0
    %1152 = vmatpush1.bf16.msra.mxu0 %v1076
    %1153 = vmatprep.subr.bf16.mxu0 0
    %1154 = vmatpush1.bf16.msra.mxu0 %v1077
    %1155 = vmatprep.subr.bf16.mxu0 0
    %1156 = vmatpush1.bf16.msra.mxu0 %v1078
    %1157 = vmatprep.subr.bf16.mxu0 0
    %1158 = vmatpush1.bf16.msra.mxu0 %v1079
    %1159 = vmatprep.subr.bf16.mxu0 0
    %1160 = vmatpush1.bf16.msra.mxu0 %v1080
    %1161 = vmatprep.subr.bf16.mxu0 0
    %1162 = vmatpush1.bf16.msra.mxu0 %v1081
    %1163 = vmatprep.subr.bf16.mxu0 0
    %1164 = vmatpush1.bf16.msra.mxu0 0
    %1165 = vmatprep.subr.bf16.mxu0 0
    %1166 = vmatpush1.bf16.msra.mxu0 0
    %1167 = vmatprep.subr.bf16.mxu0 0
    %1168 = vmatpush1.bf16.msra.mxu0 0
    %1169 = vmatprep.subr.bf16.mxu0 0
    %1170 = vmatpush1.bf16.msra.mxu0 0
    %1171 = vmatprep.subr.bf16.mxu0 0
    %1172 = vmatpush1.bf16.msra.mxu0 0
    %1173 = vmatprep.subr.bf16.mxu0 0
    %1174 = vmatpush1.bf16.msra.mxu0 0
    %1175 = vmatprep.subr.bf16.mxu0 0
    %1176 = vmatpush1.bf16.msra.mxu0 0
    %1177 = vmatprep.subr.bf16.mxu0 0
    %1178 = vmatpush1.bf16.msra.mxu0 0
    %1179 = vmatprep.mubr.bf16.mxu0 0
    %1180 = vmatmul.mubr.bf16.gmra.mrb[0].mxu0 %v906
    %v1181 = vpop.f32.mrb[0].mxu0
    %v1182 = vadd.f32 %v1141, %v1181
    %v1183 = vpop.f32.mrb[0].mxu0
    %v1184 = vpop.f32.mrb[0].mxu0
    %v1185 = vadd.f32 %v1144, %v1184
    %v1186 = vpop.f32.mrb[0].mxu0
    %1187 = vdwg.mxu0
    %v1188 = vmax.f32 %v1182, 0.0
    %v1189 = vmax.f32 %v1185, 0.0
    %v1190 = vpack.c.bf16 %v1189, %v1188
    %v1191 = vld [vmem:[%s5] sm:$0xf]
    %v1192 = vld [vmem:[%s5 + $0x4] sm:$0xf]
    %v1193 = vld [vmem:[%s5 + $0x8] sm:$0xf]
    %v1194 = vld [vmem:[%s5 + $0xc] sm:$0xf]
    %v1195 = vld [vmem:[%s5 + $0x10] sm:$0xf]
    %v1196 = vld [vmem:[%s5 + $0x14] sm:$0xf]
    %v1197 = vld [vmem:[%s5 + $0x18] sm:$0xf]
    %v1198 = vld [vmem:[%s5 + $0x1c] sm:$0xf]
    %v1199 = vld [vmem:[%s5 + $0x20] sm:$0xf]
    %v1200 = vld [vmem:[%s5 + $0x24] sm:$0xf]
    %v1201 = vld [vmem:[%s5 + $0x28] sm:$0xf]
    %v1202 = vld [vmem:[%s5 + $0x2c] sm:$0xf]
    %v1203 = vld [vmem:[%s5 + $0x30] sm:$0xf]
    %v1204 = vld [vmem:[%s5 + $0x34] sm:$0xf]
    %v1205 = vld [vmem:[%s5 + $0x38] sm:$0xf]
    %v1206 = vld [vmem:[%s5 + $0x3c] sm:$0xf]
    %v1207 = vld [vmem:[%s6] sm:$0x1]
    %v1209 = vlaneseq
    %v1210 = vshrl.u32 %v1209, 7
    %v1211 = vsub.s32 0, %v1210
    %v1212 = vrot.slane %v1207, %v1211
    %v1230 = vunpack.c.l.b16 %v1191
    %v1231 = vunpack.c.l.b16 %v1192
    %v1232 = vunpack.c.l.b16 %v1193
    %v1233 = vunpack.c.l.b16 %v1194
    %v1234 = vunpack.c.l.b16 %v1195
    %v1235 = vunpack.c.l.b16 %v1196
    %v1236 = vunpack.c.l.b16 %v1197
    %v1237 = vunpack.c.l.b16 %v1198
    %v1238 = vunpack.c.l.b16 %v1199
    %v1239 = vunpack.c.l.b16 %v1200
    %v1240 = vunpack.c.l.b16 %v1201
    %v1241 = vunpack.c.l.b16 %v1202
    %v1242 = vunpack.c.l.b16 %v1203
    %v1243 = vunpack.c.l.b16 %v1204
    %v1244 = vunpack.c.l.b16 %v1205
    %v1245 = vunpack.c.l.b16 %v1206
    %v1246 = vpack.c.b16 %v1231, %v1230
    %v1247 = vpack.c.b16 %v1233, %v1232
    %v1248 = vpack.c.b16 %v1235, %v1234
    %v1249 = vpack.c.b16 %v1237, %v1236
    %v1250 = vpack.c.b16 %v1239, %v1238
    %v1251 = vpack.c.b16 %v1241, %v1240
    %v1252 = vpack.c.b16 %v1243, %v1242
    %v1253 = vpack.c.b16 %v1245, %v1244
    %1262 = vmatprep.subr.bf16.mxu0 0
    %1263 = vmatpush1.bf16.msra.mxu0 %v1246
    %1264 = vmatprep.subr.bf16.mxu0 0
    %1265 = vmatpush1.bf16.msra.mxu0 %v1247
    %1266 = vmatprep.subr.bf16.mxu0 0
    %1267 = vmatpush1.bf16.msra.mxu0 %v1248
    %1268 = vmatprep.subr.bf16.mxu0 0
    %1269 = vmatpush1.bf16.msra.mxu0 %v1249
    %1270 = vmatprep.subr.bf16.mxu0 0
    %1271 = vmatpush1.bf16.msra.mxu0 %v1250
    %1272 = vmatprep.subr.bf16.mxu0 0
    %1273 = vmatpush1.bf16.msra.mxu0 %v1251
    %1274 = vmatprep.subr.bf16.mxu0 0
    %1275 = vmatpush1.bf16.msra.mxu0 %v1252
    %1276 = vmatprep.subr.bf16.mxu0 0
    %1277 = vmatpush1.bf16.msra.mxu0 %v1253
    %1278 = vmatprep.subr.bf16.mxu0 0
    %1279 = vmatpush1.bf16.msra.mxu0 0
    %1280 = vmatprep.subr.bf16.mxu0 0
    %1281 = vmatpush1.bf16.msra.mxu0 0
    %1282 = vmatprep.subr.bf16.mxu0 0
    %1283 = vmatpush1.bf16.msra.mxu0 0
    %1284 = vmatprep.subr.bf16.mxu0 0
    %1285 = vmatpush1.bf16.msra.mxu0 0
    %1286 = vmatprep.subr.bf16.mxu0 0
    %1287 = vmatpush1.bf16.msra.mxu0 0
    %1288 = vmatprep.subr.bf16.mxu0 0
    %1289 = vmatpush1.bf16.msra.mxu0 0
    %1290 = vmatprep.subr.bf16.mxu0 0
    %1291 = vmatpush1.bf16.msra.mxu0 0
    %1292 = vmatprep.subr.bf16.mxu0 0
    %1293 = vmatpush1.bf16.msra.mxu0 0
    %1294 = vmatprep.mubr.bf16.mxu0 0
    %1295 = vmatmul.mubr.bf16.gmra.mrb[0].mxu0 %v1190
    %v1296 = vpop.f32.mrb[0].mxu0
    %v1297 = vadd.f32 %v1212, %v1296
    %v1298 = vpop.f32.mrb[0].mxu0
    %v1299 = vpop.f32.mrb[0].mxu0
    %v1300 = vadd.f32 %v1212, %v1299
    %v1301 = vpop.f32.mrb[0].mxu0
    %1302 = vdwg.mxu0
    %1303 = vst [vmem:[#allocation2] sm:$0xff] %v1297
    %1304 = vst [vmem:[#allocation2 + $0x8] sm:$0xff] %v1300
    %v1305 = vpack.c.bf16 %v1300, %v1297
    %v1306 = vld [vmem:[%s7] sm:$0xf]
    %v1307 = vld [vmem:[%s7 + $0x4] sm:$0xf]
    %v1308 = vld [vmem:[%s7 + $0x8] sm:$0xf]
    %v1309 = vld [vmem:[%s7 + $0xc] sm:$0xf]
    %v1310 = vld [vmem:[%s7 + $0x10] sm:$0xf]
    %v1311 = vld [vmem:[%s7 + $0x14] sm:$0xf]
    %v1312 = vld [vmem:[%s7 + $0x18] sm:$0xf]
    %v1313 = vld [vmem:[%s7 + $0x1c] sm:$0xf]
    %v1314 = vld [vmem:[%s7 + $0x20] sm:$0xf]
    %v1315 = vld [vmem:[%s7 + $0x24] sm:$0xf]
    %v1316 = vld [vmem:[%s7 + $0x28] sm:$0xf]
    %v1317 = vld [vmem:[%s7 + $0x2c] sm:$0xf]
    %v1318 = vld [vmem:[%s7 + $0x30] sm:$0xf]
    %v1319 = vld [vmem:[%s7 + $0x34] sm:$0xf]
    %v1320 = vld [vmem:[%s7 + $0x38] sm:$0xf]
    %v1321 = vld [vmem:[%s7 + $0x3c] sm:$0xf]
    %v1322 = vld [vmem:[%s8] sm:$0x1]
    %v1324 = vlaneseq
    %v1325 = vshrl.u32 %v1324, 7
    %v1326 = vsub.s32 0, %v1325
    %v1327 = vrot.slane %v1322, %v1326
    %v1345 = vunpack.c.l.b16 %v1306
    %v1346 = vunpack.c.l.b16 %v1307
    %v1347 = vunpack.c.l.b16 %v1308
    %v1348 = vunpack.c.l.b16 %v1309
    %v1349 = vunpack.c.l.b16 %v1310
    %v1350 = vunpack.c.l.b16 %v1311
    %v1351 = vunpack.c.l.b16 %v1312
    %v1352 = vunpack.c.l.b16 %v1313
    %v1353 = vunpack.c.l.b16 %v1314
    %v1354 = vunpack.c.l.b16 %v1315
    %v1355 = vunpack.c.l.b16 %v1316
    %v1356 = vunpack.c.l.b16 %v1317
    %v1357 = vunpack.c.l.b16 %v1318
    %v1358 = vunpack.c.l.b16 %v1319
    %v1359 = vunpack.c.l.b16 %v1320
    %v1360 = vunpack.c.l.b16 %v1321
    %v1361 = vpack.c.b16 %v1346, %v1345
    %v1362 = vpack.c.b16 %v1348, %v1347
    %v1363 = vpack.c.b16 %v1350, %v1349
    %v1364 = vpack.c.b16 %v1352, %v1351
    %v1365 = vpack.c.b16 %v1354, %v1353
    %v1366 = vpack.c.b16 %v1356, %v1355
    %v1367 = vpack.c.b16 %v1358, %v1357
    %v1368 = vpack.c.b16 %v1360, %v1359
    %1377 = vmatprep.subr.bf16.mxu0 0
    %1378 = vmatpush1.bf16.msra.mxu0 %v1361
    %1379 = vmatprep.subr.bf16.mxu0 0
    %1380 = vmatpush1.bf16.msra.mxu0 %v1362
    %1381 = vmatprep.subr.bf16.mxu0 0
    %1382 = vmatpush1.bf16.msra.mxu0 %v1363
    %1383 = vmatprep.subr.bf16.mxu0 0
    %1384 = vmatpush1.bf16.msra.mxu0 %v1364
    %1385 = vmatprep.subr.bf16.mxu0 0
    %1386 = vmatpush1.bf16.msra.mxu0 %v1365
    %1387 = vmatprep.subr.bf16.mxu0 0
    %1388 = vmatpush1.bf16.msra.mxu0 %v1366
    %1389 = vmatprep.subr.bf16.mxu0 0
    %1390 = vmatpush1.bf16.msra.mxu0 %v1367
    %1391 = vmatprep.subr.bf16.mxu0 0
    %1392 = vmatpush1.bf16.msra.mxu0 %v1368
    %1393 = vmatprep.subr.bf16.mxu0 0
    %1394 = vmatpush1.bf16.msra.mxu0 0
    %1395 = vmatprep.subr.bf16.mxu0 0
    %1396 = vmatpush1.bf16.msra.mxu0 0
    %1397 = vmatprep.subr.bf16.mxu0 0
    %1398 = vmatpush1.bf16.msra.mxu0 0
    %1399 = vmatprep.subr.bf16.mxu0 0
    %1400 = vmatpush1.bf16.msra.mxu0 0
    %1401 = vmatprep.subr.bf16.mxu0 0
    %1402 = vmatpush1.bf16.msra.mxu0 0
    %1403 = vmatprep.subr.bf16.mxu0 0
    %1404 = vmatpush1.bf16.msra.mxu0 0
    %1405 = vmatprep.subr.bf16.mxu0 0
    %1406 = vmatpush1.bf16.msra.mxu0 0
    %1407 = vmatprep.subr.bf16.mxu0 0
    %1408 = vmatpush1.bf16.msra.mxu0 0
    %1409 = vmatprep.mubr.bf16.mxu0 0
    %1410 = vmatmul.mubr.bf16.gmra.mrb[0].mxu0 %v1305
    %v1411 = vpop.f32.mrb[0].mxu0
    %v1412 = vadd.f32 %v1327, %v1411
    %v1413 = vpop.f32.mrb[0].mxu0
    %v1414 = vpop.f32.mrb[0].mxu0
    %v1415 = vadd.f32 %v1327, %v1414
    %v1416 = vpop.f32.mrb[0].mxu0
    %1417 = vdwg.mxu0
    %v1418 = vmax.f32 %v1412, 0.0
    %v1419 = vmax.f32 %v1415, 0.0
    %v1420 = vpack.c.bf16 %v1419, %v1418
    %v1421 = vld [vmem:[%s9] sm:$0xff]
    %v1422 = vld [vmem:[%s9 + $0x8] sm:$0xf]
    %v1423 = vld [vmem:[%s9 + $0xc] sm:$0xff]
    %v1424 = vld [vmem:[%s9 + $0x14] sm:$0xf]
    %v1425 = vld [vmem:[%s9 + $0x18] sm:$0xff]
    %v1426 = vld [vmem:[%s9 + $0x20] sm:$0xf]
    %v1427 = vld [vmem:[%s9 + $0x24] sm:$0xff]
    %v1428 = vld [vmem:[%s9 + $0x2c] sm:$0xf]
    %v1429 = vld [vmem:[%s9 + $0x30] sm:$0xff]
    %v1430 = vld [vmem:[%s9 + $0x38] sm:$0xf]
    %v1431 = vld [vmem:[%s9 + $0x3c] sm:$0xff]
    %v1432 = vld [vmem:[%s9 + $0x44] sm:$0xf]
    %v1433 = vld [vmem:[%s9 + $0x48] sm:$0xff]
    %v1434 = vld [vmem:[%s9 + $0x50] sm:$0xf]
    %v1435 = vld [vmem:[%s9 + $0x54] sm:$0xff]
    %v1436 = vld [vmem:[%s9 + $0x5c] sm:$0xf]
    %v1437 = vld [vmem:[%s9 + $0x60] sm:$0xff]
    %v1438 = vld [vmem:[%s9 + $0x68] sm:$0xf]
    %v1439 = vld [vmem:[%s9 + $0x6c] sm:$0xff]
    %v1440 = vld [vmem:[%s9 + $0x74] sm:$0xf]
    %v1441 = vld [vmem:[%s9 + $0x78] sm:$0xff]
    %v1442 = vld [vmem:[%s9 + $0x80] sm:$0xf]
    %v1443 = vld [vmem:[%s9 + $0x84] sm:$0xff]
    %v1444 = vld [vmem:[%s9 + $0x8c] sm:$0xf]
    %v1445 = vld [vmem:[%s9 + $0x90] sm:$0xff]
    %v1446 = vld [vmem:[%s9 + $0x98] sm:$0xf]
    %v1447 = vld [vmem:[%s9 + $0x9c] sm:$0xff]
    %v1448 = vld [vmem:[%s9 + $0xa4] sm:$0xf]
    %v1449 = vld [vmem:[%s9 + $0xa8] sm:$0xff]
    %v1450 = vld [vmem:[%s9 + $0xb0] sm:$0xf]
    %v1451 = vld [vmem:[%s9 + $0xb4] sm:$0xff]
    %v1452 = vld [vmem:[%s9 + $0xbc] sm:$0xf]
    %v1453 = vld [vmem:[%s10] sm:$0x7]
    %v1455 = vlaneseq
    %v1456 = vshrl.u32 %v1455, 7
    %v1457 = vsub.s32 0, %v1456
    %v1458 = vrot.slane %v1453, %v1457
    %v1459 = vlaneseq
    %v1460 = vshrl.u32 %v1459, 7
    %v1461 = vsub.s32 1, %v1460
    %v1462 = vrot.slane %v1453, %v1461
    %v1463 = vlaneseq
    %v1464 = vshrl.u32 %v1463, 7
    %v1465 = vsub.s32 2, %v1464
    %v1466 = vrot.slane %v1453, %v1465
    %v1502 = vunpack.c.l.b16 %v1421
    %v1503 = vunpack.c.h.b16 %v1421
    %v1504 = vunpack.c.l.b16 %v1422
    %v1505 = vunpack.c.l.b16 %v1423
    %v1506 = vunpack.c.h.b16 %v1423
    %v1507 = vunpack.c.l.b16 %v1424
    %v1508 = vunpack.c.l.b16 %v1425
    %v1509 = vunpack.c.h.b16 %v1425
    %v1510 = vunpack.c.l.b16 %v1426
    %v1511 = vunpack.c.l.b16 %v1427
    %v1512 = vunpack.c.h.b16 %v1427
    %v1513 = vunpack.c.l.b16 %v1428
    %v1514 = vunpack.c.l.b16 %v1429
    %v1515 = vunpack.c.h.b16 %v1429
    %v1516 = vunpack.c.l.b16 %v1430
    %v1517 = vunpack.c.l.b16 %v1431
    %v1518 = vunpack.c.h.b16 %v1431
    %v1519 = vunpack.c.l.b16 %v1432
    %v1520 = vunpack.c.l.b16 %v1433
    %v1521 = vunpack.c.h.b16 %v1433
    %v1522 = vunpack.c.l.b16 %v1434
    %v1523 = vunpack.c.l.b16 %v1435
    %v1524 = vunpack.c.h.b16 %v1435
    %v1525 = vunpack.c.l.b16 %v1436
    %v1526 = vunpack.c.l.b16 %v1437
    %v1527 = vunpack.c.h.b16 %v1437
    %v1528 = vunpack.c.l.b16 %v1438
    %v1529 = vunpack.c.l.b16 %v1439
    %v1530 = vunpack.c.h.b16 %v1439
    %v1531 = vunpack.c.l.b16 %v1440
    %v1532 = vunpack.c.l.b16 %v1441
    %v1533 = vunpack.c.h.b16 %v1441
    %v1534 = vunpack.c.l.b16 %v1442
    %v1535 = vunpack.c.l.b16 %v1443
    %v1536 = vunpack.c.h.b16 %v1443
    %v1537 = vunpack.c.l.b16 %v1444
    %v1538 = vunpack.c.l.b16 %v1445
    %v1539 = vunpack.c.h.b16 %v1445
    %v1540 = vunpack.c.l.b16 %v1446
    %v1541 = vunpack.c.l.b16 %v1447
    %v1542 = vunpack.c.h.b16 %v1447
    %v1543 = vunpack.c.l.b16 %v1448
    %v1544 = vunpack.c.l.b16 %v1449
    %v1545 = vunpack.c.h.b16 %v1449
    %v1546 = vunpack.c.l.b16 %v1450
    %v1547 = vunpack.c.l.b16 %v1451
    %v1548 = vunpack.c.h.b16 %v1451
    %v1549 = vunpack.c.l.b16 %v1452
    %v1550 = vpack.c.b16 %v1505, %v1502
    %v1551 = vpack.c.b16 %v1506, %v1503
    %v1552 = vpack.c.b16 %v1507, %v1504
    %v1553 = vpack.c.b16 %v1511, %v1508
    %v1554 = vpack.c.b16 %v1512, %v1509
    %v1555 = vpack.c.b16 %v1513, %v1510
    %v1556 = vpack.c.b16 %v1517, %v1514
    %v1557 = vpack.c.b16 %v1518, %v1515
    %v1558 = vpack.c.b16 %v1519, %v1516
    %v1559 = vpack.c.b16 %v1523, %v1520
    %v1560 = vpack.c.b16 %v1524, %v1521
    %v1561 = vpack.c.b16 %v1525, %v1522
    %v1562 = vpack.c.b16 %v1529, %v1526
    %v1563 = vpack.c.b16 %v1530, %v1527
    %v1564 = vpack.c.b16 %v1531, %v1528
    %v1565 = vpack.c.b16 %v1535, %v1532
    %v1566 = vpack.c.b16 %v1536, %v1533
    %v1567 = vpack.c.b16 %v1537, %v1534
    %v1568 = vpack.c.b16 %v1541, %v1538
    %v1569 = vpack.c.b16 %v1542, %v1539
    %v1570 = vpack.c.b16 %v1543, %v1540
    %v1571 = vpack.c.b16 %v1547, %v1544
    %v1572 = vpack.c.b16 %v1548, %v1545
    %v1573 = vpack.c.b16 %v1549, %v1546
    %1598 = vmatprep.subr.bf16.mxu0 %v1551
    %1599 = vmatpush1.bf16.msra.mxu0 %v1550
    %1600 = vmatprep.subr.bf16.mxu0 %v1554
    %1601 = vmatpush1.bf16.msra.mxu0 %v1553
    %1602 = vmatprep.subr.bf16.mxu0 %v1557
    %1603 = vmatpush1.bf16.msra.mxu0 %v1556
    %1604 = vmatprep.subr.bf16.mxu0 %v1560
    %1605 = vmatpush1.bf16.msra.mxu0 %v1559
    %1606 = vmatprep.subr.bf16.mxu0 %v1563
    %1607 = vmatpush1.bf16.msra.mxu0 %v1562
    %1608 = vmatprep.subr.bf16.mxu0 %v1566
    %1609 = vmatpush1.bf16.msra.mxu0 %v1565
    %1610 = vmatprep.subr.bf16.mxu0 %v1569
    %1611 = vmatpush1.bf16.msra.mxu0 %v1568
    %1612 = vmatprep.subr.bf16.mxu0 %v1572
    %1613 = vmatpush1.bf16.msra.mxu0 %v1571
    %1614 = vmatprep.subr.bf16.mxu0 0
    %1615 = vmatpush1.bf16.msra.mxu0 0
    %1616 = vmatprep.subr.bf16.mxu0 0
    %1617 = vmatpush1.bf16.msra.mxu0 0
    %1618 = vmatprep.subr.bf16.mxu0 0
    %1619 = vmatpush1.bf16.msra.mxu0 0
    %1620 = vmatprep.subr.bf16.mxu0 0
    %1621 = vmatpush1.bf16.msra.mxu0 0
    %1622 = vmatprep.subr.bf16.mxu0 0
    %1623 = vmatpush1.bf16.msra.mxu0 0
    %1624 = vmatprep.subr.bf16.mxu0 0
    %1625 = vmatpush1.bf16.msra.mxu0 0
    %1626 = vmatprep.subr.bf16.mxu0 0
    %1627 = vmatpush1.bf16.msra.mxu0 0
    %1628 = vmatprep.subr.bf16.mxu0 0
    %1629 = vmatpush1.bf16.msra.mxu0 0
    %1630 = vmatprep.mubr.bf16.mxu0 0
    %1631 = vmatmul.mubr.bf16.gmra.mrb[0].mxu0 %v1420
    %v1632 = vpop.f32.mrb[0].mxu0
    %v1633 = vadd.f32 %v1458, %v1632
    %v1634 = vpop.f32.mrb[0].mxu0
    %v1635 = vadd.f32 %v1462, %v1634
    %v1636 = vpop.f32.mrb[0].mxu0
    %v1637 = vadd.f32 %v1458, %v1636
    %v1638 = vpop.f32.mrb[0].mxu0
    %v1639 = vadd.f32 %v1462, %v1638
    %1640 = vdwg.mxu0
    %1641 = vmatprep.subr.bf16.mxu0 0
    %1642 = vmatpush1.bf16.msra.mxu0 %v1552
    %1643 = vmatprep.subr.bf16.mxu0 0
    %1644 = vmatpush1.bf16.msra.mxu0 %v1555
    %1645 = vmatprep.subr.bf16.mxu0 0
    %1646 = vmatpush1.bf16.msra.mxu0 %v1558
    %1647 = vmatprep.subr.bf16.mxu0 0
    %1648 = vmatpush1.bf16.msra.mxu0 %v1561
    %1649 = vmatprep.subr.bf16.mxu0 0
    %1650 = vmatpush1.bf16.msra.mxu0 %v1564
    %1651 = vmatprep.subr.bf16.mxu0 0
    %1652 = vmatpush1.bf16.msra.mxu0 %v1567
    %1653 = vmatprep.subr.bf16.mxu0 0
    %1654 = vmatpush1.bf16.msra.mxu0 %v1570
    %1655 = vmatprep.subr.bf16.mxu0 0
    %1656 = vmatpush1.bf16.msra.mxu0 %v1573
    %1657 = vmatprep.subr.bf16.mxu0 0
    %1658 = vmatpush1.bf16.msra.mxu0 0
    %1659 = vmatprep.subr.bf16.mxu0 0
    %1660 = vmatpush1.bf16.msra.mxu0 0
    %1661 = vmatprep.subr.bf16.mxu0 0
    %1662 = vmatpush1.bf16.msra.mxu0 0
    %1663 = vmatprep.subr.bf16.mxu0 0
    %1664 = vmatpush1.bf16.msra.mxu0 0
    %1665 = vmatprep.subr.bf16.mxu0 0
    %1666 = vmatpush1.bf16.msra.mxu0 0
    %1667 = vmatprep.subr.bf16.mxu0 0
    %1668 = vmatpush1.bf16.msra.mxu0 0
    %1669 = vmatprep.subr.bf16.mxu0 0
    %1670 = vmatpush1.bf16.msra.mxu0 0
    %1671 = vmatprep.subr.bf16.mxu0 0
    %1672 = vmatpush1.bf16.msra.mxu0 0
    %1673 = vmatprep.mubr.bf16.mxu0 0
    %1674 = vmatmul.mubr.bf16.gmra.mrb[0].mxu0 %v1420
    %v1675 = vpop.f32.mrb[0].mxu0
    %v1676 = vadd.f32 %v1466, %v1675
    %v1677 = vpop.f32.mrb[0].mxu0
    %v1678 = vpop.f32.mrb[0].mxu0
    %v1679 = vadd.f32 %v1466, %v1678
    %v1680 = vpop.f32.mrb[0].mxu0
    %1681 = vdwg.mxu0
    %v1682 = vmax.f32 %v1633, 0.0
    %v1683 = vmax.f32 %v1635, 0.0
    %v1684 = vmax.f32 %v1676, 0.0
    %v1685 = vmax.f32 %v1637, 0.0
    %v1686 = vmax.f32 %v1639, 0.0
    %v1687 = vmax.f32 %v1679, 0.0
    %v1688 = vpack.c.bf16 %v1685, %v1682
    %v1689 = vpack.c.bf16 %v1686, %v1683
    %v1690 = vpack.c.bf16 %v1687, %v1684
    %v1691 = vld [vmem:[%s11] sm:$0xff]
    %v1692 = vld [vmem:[%s11 + $0x8] sm:$0xff]
    %v1693 = vld [vmem:[%s11 + $0x10] sm:$0xff]
    %v1694 = vld [vmem:[%s11 + $0x18] sm:$0xff]
    %v1695 = vld [vmem:[%s11 + $0x20] sm:$0xff]
    %v1696 = vld [vmem:[%s11 + $0x28] sm:$0xff]
    %v1697 = vld [vmem:[%s11 + $0x30] sm:$0xff]
    %v1698 = vld [vmem:[%s11 + $0x38] sm:$0xff]
    %v1699 = vld [vmem:[%s11 + $0x40] sm:$0xff]
    %v1700 = vld [vmem:[%s11 + $0x48] sm:$0xff]
    %v1701 = vld [vmem:[%s11 + $0x50] sm:$0xff]
    %v1702 = vld [vmem:[%s11 + $0x58] sm:$0xff]
    %v1703 = vld [vmem:[%s11 + $0x60] sm:$0xff]
    %v1704 = vld [vmem:[%s11 + $0x68] sm:$0xff]
    %v1705 = vld [vmem:[%s11 + $0x70] sm:$0xff]
    %v1706 = vld [vmem:[%s11 + $0x78] sm:$0xff]
    %v1707 = vld [vmem:[%s11 + $0x80] sm:$0xff]
    %v1708 = vld [vmem:[%s11 + $0x88] sm:$0xff]
    %v1709 = vld [vmem:[%s11 + $0x90] sm:$0xff]
    %v1710 = vld [vmem:[%s11 + $0x98] sm:$0xff]
    %v1711 = vld [vmem:[%s11 + $0xa0] sm:$0xff]
    %v1712 = vld [vmem:[%s11 + $0xa8] sm:$0xff]
    %v1713 = vld [vmem:[%s11 + $0xb0] sm:$0xff]
    %v1714 = vld [vmem:[%s11 + $0xb8] sm:$0xff]
    %v1715 = vld [vmem:[%s11 + $0xc0] sm:$0xff]
    %v1716 = vld [vmem:[%s11 + $0xc8] sm:$0xff]
    %v1717 = vld [vmem:[%s11 + $0xd0] sm:$0xff]
    %v1718 = vld [vmem:[%s11 + $0xd8] sm:$0xff]
    %v1719 = vld [vmem:[%s11 + $0xe0] sm:$0xff]
    %v1720 = vld [vmem:[%s11 + $0xe8] sm:$0xff]
    %v1721 = vld [vmem:[%s11 + $0xf0] sm:$0xff]
    %v1722 = vld [vmem:[%s11 + $0xf8] sm:$0xff]
    %v1723 = vld [vmem:[%s11 + $0x100] sm:$0xff]
    %v1724 = vld [vmem:[%s11 + $0x108] sm:$0xff]
    %v1725 = vld [vmem:[%s11 + $0x110] sm:$0xff]
    %v1726 = vld [vmem:[%s11 + $0x118] sm:$0xff]
    %v1727 = vld [vmem:[%s11 + $0x120] sm:$0xff]
    %v1728 = vld [vmem:[%s11 + $0x128] sm:$0xff]
    %v1729 = vld [vmem:[%s11 + $0x130] sm:$0xff]
    %v1730 = vld [vmem:[%s11 + $0x138] sm:$0xff]
    %v1731 = vld [vmem:[%s11 + $0x140] sm:$0xff]
    %v1732 = vld [vmem:[%s11 + $0x148] sm:$0xff]
    %v1733 = vld [vmem:[%s11 + $0x150] sm:$0xff]
    %v1734 = vld [vmem:[%s11 + $0x158] sm:$0xff]
    %v1735 = vld [vmem:[%s11 + $0x160] sm:$0xff]
    %v1736 = vld [vmem:[%s11 + $0x168] sm:$0xff]
    %v1737 = vld [vmem:[%s11 + $0x170] sm:$0xff]
    %v1738 = vld [vmem:[%s11 + $0x178] sm:$0xff]
    %v1739 = vld [vmem:[%s11 + $0x180] sm:$0xff]
    %v1740 = vld [vmem:[%s11 + $0x188] sm:$0xff]
    %v1741 = vld [vmem:[%s11 + $0x190] sm:$0xff]
    %v1742 = vld [vmem:[%s11 + $0x198] sm:$0xff]
    %v1743 = vld [vmem:[%s11 + $0x1a0] sm:$0xff]
    %v1744 = vld [vmem:[%s11 + $0x1a8] sm:$0xff]
    %v1745 = vld [vmem:[%s11 + $0x1b0] sm:$0xff]
    %v1746 = vld [vmem:[%s11 + $0x1b8] sm:$0xff]
    %v1747 = vld [vmem:[%s11 + $0x1c0] sm:$0xff]
    %v1748 = vld [vmem:[%s11 + $0x1c8] sm:$0xff]
    %v1749 = vld [vmem:[%s11 + $0x1d0] sm:$0xff]
    %v1750 = vld [vmem:[%s11 + $0x1d8] sm:$0xff]
    %v1751 = vld [vmem:[%s11 + $0x1e0] sm:$0xff]
    %v1752 = vld [vmem:[%s11 + $0x1e8] sm:$0xff]
    %v1753 = vld [vmem:[%s11 + $0x1f0] sm:$0xff]
    %v1754 = vld [vmem:[%s11 + $0x1f8] sm:$0xff]
    %v1755 = vld [vmem:[%s11 + $0x200] sm:$0xff]
    %v1756 = vld [vmem:[%s11 + $0x208] sm:$0xff]
    %v1757 = vld [vmem:[%s11 + $0x210] sm:$0xff]
    %v1758 = vld [vmem:[%s11 + $0x218] sm:$0xff]
    %v1759 = vld [vmem:[%s11 + $0x220] sm:$0xff]
    %v1760 = vld [vmem:[%s11 + $0x228] sm:$0xff]
    %v1761 = vld [vmem:[%s11 + $0x230] sm:$0xff]
    %v1762 = vld [vmem:[%s11 + $0x238] sm:$0xff]
    %v1763 = vld [vmem:[%s11 + $0x240] sm:$0xff]
    %v1764 = vld [vmem:[%s11 + $0x248] sm:$0xff]
    %v1765 = vld [vmem:[%s11 + $0x250] sm:$0xff]
    %v1766 = vld [vmem:[%s11 + $0x258] sm:$0xff]
    %v1767 = vld [vmem:[%s11 + $0x260] sm:$0xff]
    %v1768 = vld [vmem:[%s11 + $0x268] sm:$0xff]
    %v1769 = vld [vmem:[%s11 + $0x270] sm:$0xff]
    %v1770 = vld [vmem:[%s11 + $0x278] sm:$0xff]
    %v1771 = vld [vmem:[%s11 + $0x280] sm:$0xff]
    %v1772 = vld [vmem:[%s11 + $0x288] sm:$0xff]
    %v1773 = vld [vmem:[%s11 + $0x290] sm:$0xff]
    %v1774 = vld [vmem:[%s11 + $0x298] sm:$0xff]
    %v1775 = vld [vmem:[%s11 + $0x2a0] sm:$0xff]
    %v1776 = vld [vmem:[%s11 + $0x2a8] sm:$0xff]
    %v1777 = vld [vmem:[%s11 + $0x2b0] sm:$0xff]
    %v1778 = vld [vmem:[%s11 + $0x2b8] sm:$0xff]
    %v1779 = vld [vmem:[%s11 + $0x2c0] sm:$0xff]
    %v1780 = vld [vmem:[%s11 + $0x2c8] sm:$0xff]
    %v1781 = vld [vmem:[%s11 + $0x2d0] sm:$0xff]
    %v1782 = vld [vmem:[%s11 + $0x2d8] sm:$0xff]
    %v1783 = vld [vmem:[%s11 + $0x2e0] sm:$0xff]
    %v1784 = vld [vmem:[%s11 + $0x2e8] sm:$0xff]
    %v1785 = vld [vmem:[%s11 + $0x2f0] sm:$0xff]
    %v1786 = vld [vmem:[%s11 + $0x2f8] sm:$0xff]
    %v1787 = vld [vmem:[%s12] sm:$0xf]
    %v1789 = vlaneseq
    %v1790 = vshrl.u32 %v1789, 7
    %v1791 = vsub.s32 0, %v1790
    %v1792 = vrot.slane %v1787, %v1791
    %v1793 = vlaneseq
    %v1794 = vshrl.u32 %v1793, 7
    %v1795 = vsub.s32 1, %v1794
    %v1796 = vrot.slane %v1787, %v1795
    %v1797 = vlaneseq
    %v1798 = vshrl.u32 %v1797, 7
    %v1799 = vsub.s32 2, %v1798
    %v1800 = vrot.slane %v1787, %v1799
    %v1801 = vlaneseq
    %v1802 = vshrl.u32 %v1801, 7
    %v1803 = vsub.s32 3, %v1802
    %v1804 = vrot.slane %v1787, %v1803
    %v1905 = vunpack.c.l.b16 %v1691
    %v1906 = vunpack.c.h.b16 %v1691
    %v1907 = vunpack.c.l.b16 %v1692
    %v1908 = vunpack.c.h.b16 %v1692
    %v1909 = vunpack.c.l.b16 %v1693
    %v1910 = vunpack.c.h.b16 %v1693
    %v1911 = vunpack.c.l.b16 %v1694
    %v1912 = vunpack.c.h.b16 %v1694
    %v1913 = vunpack.c.l.b16 %v1695
    %v1914 = vunpack.c.h.b16 %v1695
    %v1915 = vunpack.c.l.b16 %v1696
    %v1916 = vunpack.c.h.b16 %v1696
    %v1917 = vunpack.c.l.b16 %v1697
    %v1918 = vunpack.c.h.b16 %v1697
    %v1919 = vunpack.c.l.b16 %v1698
    %v1920 = vunpack.c.h.b16 %v1698
    %v1921 = vunpack.c.l.b16 %v1699
    %v1922 = vunpack.c.h.b16 %v1699
    %v1923 = vunpack.c.l.b16 %v1700
    %v1924 = vunpack.c.h.b16 %v1700
    %v1925 = vunpack.c.l.b16 %v1701
    %v1926 = vunpack.c.h.b16 %v1701
    %v1927 = vunpack.c.l.b16 %v1702
    %v1928 = vunpack.c.h.b16 %v1702
    %v1929 = vunpack.c.l.b16 %v1703
    %v1930 = vunpack.c.h.b16 %v1703
    %v1931 = vunpack.c.l.b16 %v1704
    %v1932 = vunpack.c.h.b16 %v1704
    %v1933 = vunpack.c.l.b16 %v1705
    %v1934 = vunpack.c.h.b16 %v1705
    %v1935 = vunpack.c.l.b16 %v1706
    %v1936 = vunpack.c.h.b16 %v1706
    %v1937 = vunpack.c.l.b16 %v1707
    %v1938 = vunpack.c.h.b16 %v1707
    %v1939 = vunpack.c.l.b16 %v1708
    %v1940 = vunpack.c.h.b16 %v1708
    %v1941 = vunpack.c.l.b16 %v1709
    %v1942 = vunpack.c.h.b16 %v1709
    %v1943 = vunpack.c.l.b16 %v1710
    %v1944 = vunpack.c.h.b16 %v1710
    %v1945 = vunpack.c.l.b16 %v1711
    %v1946 = vunpack.c.h.b16 %v1711
    %v1947 = vunpack.c.l.b16 %v1712
    %v1948 = vunpack.c.h.b16 %v1712
    %v1949 = vunpack.c.l.b16 %v1713
    %v1950 = vunpack.c.h.b16 %v1713
    %v1951 = vunpack.c.l.b16 %v1714
    %v1952 = vunpack.c.h.b16 %v1714
    %v1953 = vunpack.c.l.b16 %v1715
    %v1954 = vunpack.c.h.b16 %v1715
    %v1955 = vunpack.c.l.b16 %v1716
    %v1956 = vunpack.c.h.b16 %v1716
    %v1957 = vunpack.c.l.b16 %v1717
    %v1958 = vunpack.c.h.b16 %v1717
    %v1959 = vunpack.c.l.b16 %v1718
    %v1960 = vunpack.c.h.b16 %v1718
    %v1961 = vunpack.c.l.b16 %v1719
    %v1962 = vunpack.c.h.b16 %v1719
    %v1963 = vunpack.c.l.b16 %v1720
    %v1964 = vunpack.c.h.b16 %v1720
    %v1965 = vunpack.c.l.b16 %v1721
    %v1966 = vunpack.c.h.b16 %v1721
    %v1967 = vunpack.c.l.b16 %v1722
    %v1968 = vunpack.c.h.b16 %v1722
    %v1969 = vunpack.c.l.b16 %v1723
    %v1970 = vunpack.c.h.b16 %v1723
    %v1971 = vunpack.c.l.b16 %v1724
    %v1972 = vunpack.c.h.b16 %v1724
    %v1973 = vunpack.c.l.b16 %v1725
    %v1974 = vunpack.c.h.b16 %v1725
    %v1975 = vunpack.c.l.b16 %v1726
    %v1976 = vunpack.c.h.b16 %v1726
    %v1977 = vunpack.c.l.b16 %v1727
    %v1978 = vunpack.c.h.b16 %v1727
    %v1979 = vunpack.c.l.b16 %v1728
    %v1980 = vunpack.c.h.b16 %v1728
    %v1981 = vunpack.c.l.b16 %v1729
    %v1982 = vunpack.c.h.b16 %v1729
    %v1983 = vunpack.c.l.b16 %v1730
    %v1984 = vunpack.c.h.b16 %v1730
    %v1985 = vunpack.c.l.b16 %v1731
    %v1986 = vunpack.c.h.b16 %v1731
    %v1987 = vunpack.c.l.b16 %v1732
    %v1988 = vunpack.c.h.b16 %v1732
    %v1989 = vunpack.c.l.b16 %v1733
    %v1990 = vunpack.c.h.b16 %v1733
    %v1991 = vunpack.c.l.b16 %v1734
    %v1992 = vunpack.c.h.b16 %v1734
    %v1993 = vunpack.c.l.b16 %v1735
    %v1994 = vunpack.c.h.b16 %v1735
    %v1995 = vunpack.c.l.b16 %v1736
    %v1996 = vunpack.c.h.b16 %v1736
    %v1997 = vunpack.c.l.b16 %v1737
    %v1998 = vunpack.c.h.b16 %v1737
    %v1999 = vunpack.c.l.b16 %v1738
    %v2000 = vunpack.c.h.b16 %v1738
    %v2001 = vunpack.c.l.b16 %v1739
    %v2002 = vunpack.c.h.b16 %v1739
    %v2003 = vunpack.c.l.b16 %v1740
    %v2004 = vunpack.c.h.b16 %v1740
    %v2005 = vunpack.c.l.b16 %v1741
    %v2006 = vunpack.c.h.b16 %v1741
    %v2007 = vunpack.c.l.b16 %v1742
    %v2008 = vunpack.c.h.b16 %v1742
    %v2009 = vunpack.c.l.b16 %v1743
    %v2010 = vunpack.c.h.b16 %v1743
    %v2011 = vunpack.c.l.b16 %v1744
    %v2012 = vunpack.c.h.b16 %v1744
    %v2013 = vunpack.c.l.b16 %v1745
    %v2014 = vunpack.c.h.b16 %v1745
    %v2015 = vunpack.c.l.b16 %v1746
    %v2016 = vunpack.c.h.b16 %v1746
    %v2017 = vunpack.c.l.b16 %v1747
    %v2018 = vunpack.c.h.b16 %v1747
    %v2019 = vunpack.c.l.b16 %v1748
    %v2020 = vunpack.c.h.b16 %v1748
    %v2021 = vunpack.c.l.b16 %v1749
    %v2022 = vunpack.c.h.b16 %v1749
    %v2023 = vunpack.c.l.b16 %v1750
    %v2024 = vunpack.c.h.b16 %v1750
    %v2025 = vunpack.c.l.b16 %v1751
    %v2026 = vunpack.c.h.b16 %v1751
    %v2027 = vunpack.c.l.b16 %v1752
    %v2028 = vunpack.c.h.b16 %v1752
    %v2029 = vunpack.c.l.b16 %v1753
    %v2030 = vunpack.c.h.b16 %v1753
    %v2031 = vunpack.c.l.b16 %v1754
    %v2032 = vunpack.c.h.b16 %v1754
    %v2033 = vunpack.c.l.b16 %v1755
    %v2034 = vunpack.c.h.b16 %v1755
    %v2035 = vunpack.c.l.b16 %v1756
    %v2036 = vunpack.c.h.b16 %v1756
    %v2037 = vunpack.c.l.b16 %v1757
    %v2038 = vunpack.c.h.b16 %v1757
    %v2039 = vunpack.c.l.b16 %v1758
    %v2040 = vunpack.c.h.b16 %v1758
    %v2041 = vunpack.c.l.b16 %v1759
    %v2042 = vunpack.c.h.b16 %v1759
    %v2043 = vunpack.c.l.b16 %v1760
    %v2044 = vunpack.c.h.b16 %v1760
    %v2045 = vunpack.c.l.b16 %v1761
    %v2046 = vunpack.c.h.b16 %v1761
    %v2047 = vunpack.c.l.b16 %v1762
    %v2048 = vunpack.c.h.b16 %v1762
    %v2049 = vunpack.c.l.b16 %v1763
    %v2050 = vunpack.c.h.b16 %v1763
    %v2051 = vunpack.c.l.b16 %v1764
    %v2052 = vunpack.c.h.b16 %v1764
    %v2053 = vunpack.c.l.b16 %v1765
    %v2054 = vunpack.c.h.b16 %v1765
    %v2055 = vunpack.c.l.b16 %v1766
    %v2056 = vunpack.c.h.b16 %v1766
    %v2057 = vunpack.c.l.b16 %v1767
    %v2058 = vunpack.c.h.b16 %v1767
    %v2059 = vunpack.c.l.b16 %v1768
    %v2060 = vunpack.c.h.b16 %v1768
    %v2061 = vunpack.c.l.b16 %v1769
    %v2062 = vunpack.c.h.b16 %v1769
    %v2063 = vunpack.c.l.b16 %v1770
    %v2064 = vunpack.c.h.b16 %v1770
    %v2065 = vunpack.c.l.b16 %v1771
    %v2066 = vunpack.c.h.b16 %v1771
    %v2067 = vunpack.c.l.b16 %v1772
    %v2068 = vunpack.c.h.b16 %v1772
    %v2069 = vunpack.c.l.b16 %v1773
    %v2070 = vunpack.c.h.b16 %v1773
    %v2071 = vunpack.c.l.b16 %v1774
    %v2072 = vunpack.c.h.b16 %v1774
    %v2073 = vunpack.c.l.b16 %v1775
    %v2074 = vunpack.c.h.b16 %v1775
    %v2075 = vunpack.c.l.b16 %v1776
    %v2076 = vunpack.c.h.b16 %v1776
    %v2077 = vunpack.c.l.b16 %v1777
    %v2078 = vunpack.c.h.b16 %v1777
    %v2079 = vunpack.c.l.b16 %v1778
    %v2080 = vunpack.c.h.b16 %v1778
    %v2081 = vunpack.c.l.b16 %v1779
    %v2082 = vunpack.c.h.b16 %v1779
    %v2083 = vunpack.c.l.b16 %v1780
    %v2084 = vunpack.c.h.b16 %v1780
    %v2085 = vunpack.c.l.b16 %v1781
    %v2086 = vunpack.c.h.b16 %v1781
    %v2087 = vunpack.c.l.b16 %v1782
    %v2088 = vunpack.c.h.b16 %v1782
    %v2089 = vunpack.c.l.b16 %v1783
    %v2090 = vunpack.c.h.b16 %v1783
    %v2091 = vunpack.c.l.b16 %v1784
    %v2092 = vunpack.c.h.b16 %v1784
    %v2093 = vunpack.c.l.b16 %v1785
    %v2094 = vunpack.c.h.b16 %v1785
    %v2095 = vunpack.c.l.b16 %v1786
    %v2096 = vunpack.c.h.b16 %v1786
    %v2097 = vpack.c.b16 %v1909, %v1905
    %v2098 = vpack.c.b16 %v1910, %v1906
    %v2099 = vpack.c.b16 %v1911, %v1907
    %v2100 = vpack.c.b16 %v1912, %v1908
    %v2101 = vpack.c.b16 %v1917, %v1913
    %v2102 = vpack.c.b16 %v1918, %v1914
    %v2103 = vpack.c.b16 %v1919, %v1915
    %v2104 = vpack.c.b16 %v1920, %v1916
    %v2105 = vpack.c.b16 %v1925, %v1921
    %v2106 = vpack.c.b16 %v1926, %v1922
    %v2107 = vpack.c.b16 %v1927, %v1923
    %v2108 = vpack.c.b16 %v1928, %v1924
    %v2109 = vpack.c.b16 %v1933, %v1929
    %v2110 = vpack.c.b16 %v1934, %v1930
    %v2111 = vpack.c.b16 %v1935, %v1931
    %v2112 = vpack.c.b16 %v1936, %v1932
    %v2113 = vpack.c.b16 %v1941, %v1937
    %v2114 = vpack.c.b16 %v1942, %v1938
    %v2115 = vpack.c.b16 %v1943, %v1939
    %v2116 = vpack.c.b16 %v1944, %v1940
    %v2117 = vpack.c.b16 %v1949, %v1945
    %v2118 = vpack.c.b16 %v1950, %v1946
    %v2119 = vpack.c.b16 %v1951, %v1947
    %v2120 = vpack.c.b16 %v1952, %v1948
    %v2121 = vpack.c.b16 %v1957, %v1953
    %v2122 = vpack.c.b16 %v1958, %v1954
    %v2123 = vpack.c.b16 %v1959, %v1955
    %v2124 = vpack.c.b16 %v1960, %v1956
    %v2125 = vpack.c.b16 %v1965, %v1961
    %v2126 = vpack.c.b16 %v1966, %v1962
    %v2127 = vpack.c.b16 %v1967, %v1963
    %v2128 = vpack.c.b16 %v1968, %v1964
    %v2129 = vpack.c.b16 %v1973, %v1969
    %v2130 = vpack.c.b16 %v1974, %v1970
    %v2131 = vpack.c.b16 %v1975, %v1971
    %v2132 = vpack.c.b16 %v1976, %v1972
    %v2133 = vpack.c.b16 %v1981, %v1977
    %v2134 = vpack.c.b16 %v1982, %v1978
    %v2135 = vpack.c.b16 %v1983, %v1979
    %v2136 = vpack.c.b16 %v1984, %v1980
    %v2137 = vpack.c.b16 %v1989, %v1985
    %v2138 = vpack.c.b16 %v1990, %v1986
    %v2139 = vpack.c.b16 %v1991, %v1987
    %v2140 = vpack.c.b16 %v1992, %v1988
    %v2141 = vpack.c.b16 %v1997, %v1993
    %v2142 = vpack.c.b16 %v1998, %v1994
    %v2143 = vpack.c.b16 %v1999, %v1995
    %v2144 = vpack.c.b16 %v2000, %v1996
    %v2145 = vpack.c.b16 %v2005, %v2001
    %v2146 = vpack.c.b16 %v2006, %v2002
    %v2147 = vpack.c.b16 %v2007, %v2003
    %v2148 = vpack.c.b16 %v2008, %v2004
    %v2149 = vpack.c.b16 %v2013, %v2009
    %v2150 = vpack.c.b16 %v2014, %v2010
    %v2151 = vpack.c.b16 %v2015, %v2011
    %v2152 = vpack.c.b16 %v2016, %v2012
    %v2153 = vpack.c.b16 %v2021, %v2017
    %v2154 = vpack.c.b16 %v2022, %v2018
    %v2155 = vpack.c.b16 %v2023, %v2019
    %v2156 = vpack.c.b16 %v2024, %v2020
    %v2157 = vpack.c.b16 %v2029, %v2025
    %v2158 = vpack.c.b16 %v2030, %v2026
    %v2159 = vpack.c.b16 %v2031, %v2027
    %v2160 = vpack.c.b16 %v2032, %v2028
    %v2161 = vpack.c.b16 %v2037, %v2033
    %v2162 = vpack.c.b16 %v2038, %v2034
    %v2163 = vpack.c.b16 %v2039, %v2035
    %v2164 = vpack.c.b16 %v2040, %v2036
    %v2165 = vpack.c.b16 %v2045, %v2041
    %v2166 = vpack.c.b16 %v2046, %v2042
    %v2167 = vpack.c.b16 %v2047, %v2043
    %v2168 = vpack.c.b16 %v2048, %v2044
    %v2169 = vpack.c.b16 %v2053, %v2049
    %v2170 = vpack.c.b16 %v2054, %v2050
    %v2171 = vpack.c.b16 %v2055, %v2051
    %v2172 = vpack.c.b16 %v2056, %v2052
    %v2173 = vpack.c.b16 %v2061, %v2057
    %v2174 = vpack.c.b16 %v2062, %v2058
    %v2175 = vpack.c.b16 %v2063, %v2059
    %v2176 = vpack.c.b16 %v2064, %v2060
    %v2177 = vpack.c.b16 %v2069, %v2065
    %v2178 = vpack.c.b16 %v2070, %v2066
    %v2179 = vpack.c.b16 %v2071, %v2067
    %v2180 = vpack.c.b16 %v2072, %v2068
    %v2181 = vpack.c.b16 %v2077, %v2073
    %v2182 = vpack.c.b16 %v2078, %v2074
    %v2183 = vpack.c.b16 %v2079, %v2075
    %v2184 = vpack.c.b16 %v2080, %v2076
    %v2185 = vpack.c.b16 %v2085, %v2081
    %v2186 = vpack.c.b16 %v2086, %v2082
    %v2187 = vpack.c.b16 %v2087, %v2083
    %v2188 = vpack.c.b16 %v2088, %v2084
    %v2189 = vpack.c.b16 %v2093, %v2089
    %v2190 = vpack.c.b16 %v2094, %v2090
    %v2191 = vpack.c.b16 %v2095, %v2091
    %v2192 = vpack.c.b16 %v2096, %v2092
    %2289 = vmatprep.subr.bf16.mxu0 %v2098
    %2290 = vmatpush1.bf16.msra.mxu0 %v2097
    %2291 = vmatprep.subr.bf16.mxu0 %v2102
    %2292 = vmatpush1.bf16.msra.mxu0 %v2101
    %2293 = vmatprep.subr.bf16.mxu0 %v2106
    %2294 = vmatpush1.bf16.msra.mxu0 %v2105
    %2295 = vmatprep.subr.bf16.mxu0 %v2110
    %2296 = vmatpush1.bf16.msra.mxu0 %v2109
    %2297 = vmatprep.subr.bf16.mxu0 %v2114
    %2298 = vmatpush1.bf16.msra.mxu0 %v2113
    %2299 = vmatprep.subr.bf16.mxu0 %v2118
    %2300 = vmatpush1.bf16.msra.mxu0 %v2117
    %2301 = vmatprep.subr.bf16.mxu0 %v2122
    %2302 = vmatpush1.bf16.msra.mxu0 %v2121
    %2303 = vmatprep.subr.bf16.mxu0 %v2126
    %2304 = vmatpush1.bf16.msra.mxu0 %v2125
    %2305 = vmatprep.subr.bf16.mxu0 %v2130
    %2306 = vmatpush1.bf16.msra.mxu0 %v2129
    %2307 = vmatprep.subr.bf16.mxu0 %v2134
    %2308 = vmatpush1.bf16.msra.mxu0 %v2133
    %2309 = vmatprep.subr.bf16.mxu0 %v2138
    %2310 = vmatpush1.bf16.msra.mxu0 %v2137
    %2311 = vmatprep.subr.bf16.mxu0 %v2142
    %2312 = vmatpush1.bf16.msra.mxu0 %v2141
    %2313 = vmatprep.subr.bf16.mxu0 %v2146
    %2314 = vmatpush1.bf16.msra.mxu0 %v2145
    %2315 = vmatprep.subr.bf16.mxu0 %v2150
    %2316 = vmatpush1.bf16.msra.mxu0 %v2149
    %2317 = vmatprep.subr.bf16.mxu0 %v2154
    %2318 = vmatpush1.bf16.msra.mxu0 %v2153
    %2319 = vmatprep.subr.bf16.mxu0 %v2158
    %2320 = vmatpush1.bf16.msra.mxu0 %v2157
    %2321 = vmatprep.mubr.bf16.mxu0 %v1689
    %2322 = vmatmul.mubr.bf16.gmra.mrb[0].mxu0 %v1688
    %v2323 = vpop.f32.mrb[0].mxu0
    %v2324 = vadd.f32 %v1792, %v2323
    %v2325 = vpop.f32.mrb[0].mxu0
    %v2326 = vadd.f32 %v1796, %v2325
    %v2327 = vpop.f32.mrb[0].mxu0
    %v2328 = vadd.f32 %v1792, %v2327
    %v2329 = vpop.f32.mrb[0].mxu0
    %v2330 = vadd.f32 %v1796, %v2329
    %2331 = vdwg.mxu0
    %2332 = vmatprep.subr.bf16.mxu0 %v2162
    %2333 = vmatpush1.bf16.msra.mxu0 %v2161
    %2334 = vmatprep.subr.bf16.mxu0 %v2166
    %2335 = vmatpush1.bf16.msra.mxu0 %v2165
    %2336 = vmatprep.subr.bf16.mxu0 %v2170
    %2337 = vmatpush1.bf16.msra.mxu0 %v2169
    %2338 = vmatprep.subr.bf16.mxu0 %v2174
    %2339 = vmatpush1.bf16.msra.mxu0 %v2173
    %2340 = vmatprep.subr.bf16.mxu0 %v2178
    %2341 = vmatpush1.bf16.msra.mxu0 %v2177
    %2342 = vmatprep.subr.bf16.mxu0 %v2182
    %2343 = vmatpush1.bf16.msra.mxu0 %v2181
    %2344 = vmatprep.subr.bf16.mxu0 %v2186
    %2345 = vmatpush1.bf16.msra.mxu0 %v2185
    %2346 = vmatprep.subr.bf16.mxu0 %v2190
    %2347 = vmatpush1.bf16.msra.mxu0 %v2189
    %2348 = vmatprep.subr.bf16.mxu0 0
    %2349 = vmatpush1.bf16.msra.mxu0 0
    %2350 = vmatprep.subr.bf16.mxu0 0
    %2351 = vmatpush1.bf16.msra.mxu0 0
    %2352 = vmatprep.subr.bf16.mxu0 0
    %2353 = vmatpush1.bf16.msra.mxu0 0
    %2354 = vmatprep.subr.bf16.mxu0 0
    %2355 = vmatpush1.bf16.msra.mxu0 0
    %2356 = vmatprep.subr.bf16.mxu0 0
    %2357 = vmatpush1.bf16.msra.mxu0 0
    %2358 = vmatprep.subr.bf16.mxu0 0
    %2359 = vmatpush1.bf16.msra.mxu0 0
    %2360 = vmatprep.subr.bf16.mxu0 0
    %2361 = vmatpush1.bf16.msra.mxu0 0
    %2362 = vmatprep.subr.bf16.mxu0 0
    %2363 = vmatpush1.bf16.msra.mxu0 0
    %2364 = vmatprep.mubr.bf16.mxu0 0
    %2365 = vmatmul.mubr.bf16.gmra.mrb[0].mxu0 %v1690
    %v2366 = vpop.f32.mrb[0].mxu0
    %v2367 = vadd.f32 %v2324, %v2366
    %v2368 = vpop.f32.mrb[0].mxu0
    %v2369 = vadd.f32 %v2326, %v2368
    %v2370 = vpop.f32.mrb[0].mxu0
    %v2371 = vadd.f32 %v2328, %v2370
    %v2372 = vpop.f32.mrb[0].mxu0
    %v2373 = vadd.f32 %v2330, %v2372
    %2374 = vdwg.mxu0
    %2375 = vmatprep.subr.bf16.mxu0 %v2100
    %2376 = vmatpush1.bf16.msra.mxu0 %v2099
    %2377 = vmatprep.subr.bf16.mxu0 %v2104
    %2378 = vmatpush1.bf16.msra.mxu0 %v2103
    %2379 = vmatprep.subr.bf16.mxu0 %v2108
    %2380 = vmatpush1.bf16.msra.mxu0 %v2107
    %2381 = vmatprep.subr.bf16.mxu0 %v2112
    %2382 = vmatpush1.bf16.msra.mxu0 %v2111
    %2383 = vmatprep.subr.bf16.mxu0 %v2116
    %2384 = vmatpush1.bf16.msra.mxu0 %v2115
    %2385 = vmatprep.subr.bf16.mxu0 %v2120
    %2386 = vmatpush1.bf16.msra.mxu0 %v2119
    %2387 = vmatprep.subr.bf16.mxu0 %v2124
    %2388 = vmatpush1.bf16.msra.mxu0 %v2123
    %2389 = vmatprep.subr.bf16.mxu0 %v2128
    %2390 = vmatpush1.bf16.msra.mxu0 %v2127
    %2391 = vmatprep.subr.bf16.mxu0 %v2132
    %2392 = vmatpush1.bf16.msra.mxu0 %v2131
    %2393 = vmatprep.subr.bf16.mxu0 %v2136
    %2394 = vmatpush1.bf16.msra.mxu0 %v2135
    %2395 = vmatprep.subr.bf16.mxu0 %v2140
    %2396 = vmatpush1.bf16.msra.mxu0 %v2139
    %2397 = vmatprep.subr.bf16.mxu0 %v2144
    %2398 = vmatpush1.bf16.msra.mxu0 %v2143
    %2399 = vmatprep.subr.bf16.mxu0 %v2148
    %2400 = vmatpush1.bf16.msra.mxu0 %v2147
    %2401 = vmatprep.subr.bf16.mxu0 %v2152
    %2402 = vmatpush1.bf16.msra.mxu0 %v2151
    %2403 = vmatprep.subr.bf16.mxu0 %v2156
    %2404 = vmatpush1.bf16.msra.mxu0 %v2155
    %2405 = vmatprep.subr.bf16.mxu0 %v2160
    %2406 = vmatpush1.bf16.msra.mxu0 %v2159
    %2407 = vmatprep.mubr.bf16.mxu0 %v1689
    %2408 = vmatmul.mubr.bf16.gmra.mrb[0].mxu0 %v1688
    %v2409 = vpop.f32.mrb[0].mxu0
    %v2410 = vadd.f32 %v1800, %v2409
    %v2411 = vpop.f32.mrb[0].mxu0
    %v2412 = vadd.f32 %v1804, %v2411
    %v2413 = vpop.f32.mrb[0].mxu0
    %v2414 = vadd.f32 %v1800, %v2413
    %v2415 = vpop.f32.mrb[0].mxu0
    %v2416 = vadd.f32 %v1804, %v2415
    %2417 = vdwg.mxu0
    %2418 = vmatprep.subr.bf16.mxu0 %v2164
    %2419 = vmatpush1.bf16.msra.mxu0 %v2163
    %2420 = vmatprep.subr.bf16.mxu0 %v2168
    %2421 = vmatpush1.bf16.msra.mxu0 %v2167
    %2422 = vmatprep.subr.bf16.mxu0 %v2172
    %2423 = vmatpush1.bf16.msra.mxu0 %v2171
    %2424 = vmatprep.subr.bf16.mxu0 %v2176
    %2425 = vmatpush1.bf16.msra.mxu0 %v2175
    %2426 = vmatprep.subr.bf16.mxu0 %v2180
    %2427 = vmatpush1.bf16.msra.mxu0 %v2179
    %2428 = vmatprep.subr.bf16.mxu0 %v2184
    %2429 = vmatpush1.bf16.msra.mxu0 %v2183
    %2430 = vmatprep.subr.bf16.mxu0 %v2188
    %2431 = vmatpush1.bf16.msra.mxu0 %v2187
    %2432 = vmatprep.subr.bf16.mxu0 %v2192
    %2433 = vmatpush1.bf16.msra.mxu0 %v2191
    %2434 = vmatprep.subr.bf16.mxu0 0
    %2435 = vmatpush1.bf16.msra.mxu0 0
    %2436 = vmatprep.subr.bf16.mxu0 0
    %2437 = vmatpush1.bf16.msra.mxu0 0
    %2438 = vmatprep.subr.bf16.mxu0 0
    %2439 = vmatpush1.bf16.msra.mxu0 0
    %2440 = vmatprep.subr.bf16.mxu0 0
    %2441 = vmatpush1.bf16.msra.mxu0 0
    %2442 = vmatprep.subr.bf16.mxu0 0
    %2443 = vmatpush1.bf16.msra.mxu0 0
    %2444 = vmatprep.subr.bf16.mxu0 0
    %2445 = vmatpush1.bf16.msra.mxu0 0
    %2446 = vmatprep.subr.bf16.mxu0 0
    %2447 = vmatpush1.bf16.msra.mxu0 0
    %2448 = vmatprep.subr.bf16.mxu0 0
    %2449 = vmatpush1.bf16.msra.mxu0 0
    %2450 = vmatprep.mubr.bf16.mxu0 0
    %2451 = vmatmul.mubr.bf16.gmra.mrb[0].mxu0 %v1690
    %v2452 = vpop.f32.mrb[0].mxu0
    %v2453 = vadd.f32 %v2410, %v2452
    %v2454 = vpop.f32.mrb[0].mxu0
    %v2455 = vadd.f32 %v2412, %v2454
    %v2456 = vpop.f32.mrb[0].mxu0
    %v2457 = vadd.f32 %v2414, %v2456
    %v2458 = vpop.f32.mrb[0].mxu0
    %v2459 = vadd.f32 %v2416, %v2458
    %2460 = vdwg.mxu0
    %2461 = vst [vmem:[#allocation4] sm:$0xff] %v2367
    %2462 = vst [vmem:[#allocation4 + $0x8] sm:$0xff] %v2369
    %2463 = vst [vmem:[#allocation4 + $0x10] sm:$0xff] %v2453
    %2464 = vst [vmem:[#allocation4 + $0x18] sm:$0xff] %v2455
    %2465 = vst [vmem:[#allocation4 + $0x20] sm:$0xff] %v2371
    %2466 = vst [vmem:[#allocation4 + $0x28] sm:$0xff] %v2373
    %2467 = vst [vmem:[#allocation4 + $0x30] sm:$0xff] %v2457
    %2468 = vst [vmem:[#allocation4 + $0x38] sm:$0xff] %v2459
    // Predicated region
    $region54: #{ae_forward.1} parent=1 // pred_check
      _
    $region55: #{ae_forward.1} parent=1 // pred_check_branch
      %2470 = sbr.rel (0) target = $region57
    $region56: #{ae_forward.1} parent=1 // pred_region
      %s2472 = ssub.s32 256, 256
      %2473 = vsyncadd [#allocation3], %s2472
      %s2474 = sshll.u32 [#allocation2], 4
      %s2475 = int_to_ptr.vmem [resolvable:$true] %s2474
      %2480 = dma.vmem_to_hbm [thread:$0]  %s2475, 256, %s13, [#allocation3], 128, 128, 8
    $region57: #{ae_forward.1} parent=1 // pred_fallthru
      _
    // Predicated region
    $region58: #{ae_forward.1} parent=1 // pred_check
      _
    $region59: #{ae_forward.1} parent=1 // pred_check_branch
      %2482 = sbr.rel (0) target = $region61
    $region60: #{ae_forward.1} parent=1 // pred_region
      %s2484 = ssub.s32 1024, 1024
      %2485 = vsyncadd [#allocation5], %s2484
      %s2486 = sshll.u32 [#allocation4], 4
      %s2487 = int_to_ptr.vmem [resolvable:$true] %s2486
      %2492 = dma.vmem_to_hbm [thread:$0]  %s2487, 1024, %s14, [#allocation5], 512, 512, 32
    $region61: #{ae_forward.1} parent=1 // pred_fallthru
      _
    // Predicated region
    $region62: #{ae_forward.1} parent=1 // pred_check
      _
    $region63: #{ae_forward.1} parent=1 // pred_check_branch
      %2494 = sbr.rel (0) target = $region65
    $region64: #{ae_forward.1} parent=1 // pred_region
      %2495 = dma.done [#allocation3], 256
    $region65: #{ae_forward.1} parent=1 // pred_fallthru
      _
    // Predicated region
    $region66: #{ae_forward.1} parent=1 // pred_check
      _
    $region67: #{ae_forward.1} parent=1 // pred_check_branch
      %2497 = sbr.rel (0) target = $region69
    $region68: #{ae_forward.1} parent=1 // pred_region
      %2498 = dma.done [#allocation5], 1024
    $region69: #{ae_forward.1} parent=1 // pred_fallthru
      _
    %2499 = vsyncpa [#allocation3], 1
    %2500 = vsyncpa [#allocation5], 1

</llo_original>
